<compile_context>
chip_gen: v7x
topology: tpu7x:2x2x1
jax: 0.10.0
libtpu: 0.0.40
codegen_flags: <defaults>
</compile_context>

<pallas_src>
import jax
import jax.numpy as jnp
from jax.experimental import pallas as pl
from jax.experimental.pallas import tpu as pltpu


# ----------------------------------------------------------------------------
# Fused kernel: all LSTM layers + final Linear in one invocation.
# Ref layout: x, (w_ih_t, w_hh_t, bias) * L, fc_w, fc_b, out, seq_scratch
# ----------------------------------------------------------------------------
def _make_fused_lstm_kernel(S, B, H, num_layers):
    G = 4 * H

    def kernel(*refs):
        x_ref = refs[0]
        layer_refs = refs[1:1 + 3 * num_layers]
        fc_w_ref = refs[1 + 3 * num_layers]
        fc_b_ref = refs[2 + 3 * num_layers]          # (1,) f32 in SMEM
        out_ref = refs[3 + 3 * num_layers]
        seq_ref = refs[4 + 3 * num_layers]           # VMEM (S*B, H): inter-layer buf

        # Per-lane affine recovering all four gates from ONE tanh:
        #   i/f/o lanes (params pre-scaled x0.5): sigmoid(a) = 0.5*tanh(a/2) + 0.5
        #   g lanes     (params unscaled):        tanh(a)    = 1.0*tanh(a)   + 0.0
        lane = jax.lax.broadcasted_iota(jnp.int32, (1, G), 1)
        is_g = jnp.logical_and(lane >= 2 * H, lane < 3 * H)
        alpha = jnp.where(is_g, 1.0, 0.5).astype(jnp.float32)
        beta = jnp.where(is_g, 0.0, 0.5).astype(jnp.float32)

        inp = x_ref[...]                              # (S*B, D_in) time-major, flat
        h = None
        for l in range(num_layers):
            w_ih_t = layer_refs[3 * l][...]           # (D_in, 4H) f32, pre-scaled
            w_hh_t = layer_refs[3 * l + 1][...]       # (H,   4H) bf16, pre-scaled
            bias = layer_refs[3 * l + 2][...]         # (1,   4H) f32 == b_ih + b_hh

            # Whole-sequence input projection: one MXU pass, off the serial path.
            # Kept as a value (8 vregs at S*B=64) and sliced with static indices.
            pre = jnp.dot(inp, w_ih_t, preferred_element_type=jnp.float32) + bias

            write_seq = l < num_layers - 1            # last layer only needs final h
            h = jnp.zeros((B, H), jnp.float32)
            c = jnp.zeros((B, H), jnp.float32)

            for t in range(S):                        # serial recurrence, static idx
                z = pre[t * B:(t + 1) * B, :] + jnp.dot(
                    h.astype(jnp.bfloat16), w_hh_t,
                    preferred_element_type=jnp.float32)          # (B, 4H) [i|f|g|o]
                tg = jnp.tanh(z)                      # EUP op #1: all 4 gates at once
                gates = alpha * tg + beta             # full-vreg affine
                i_g = gates[:, 0:H]
                f_g = gates[:, H:2 * H]
                g_g = gates[:, 2 * H:3 * H]
                o_g = gates[:, 3 * H:4 * H]
                c = f_g * c + i_g * g_g
                h = o_g * jnp.tanh(c)                 # EUP op #2
                if write_seq:
                    seq_ref[pl.ds(t * B, B), :] = h   # 8-sublane-aligned store

            if write_seq:
                inp = seq_ref[...]                    # (S*B, H): next layer's input

        # Fused head: Linear(H, 1) as VPU multiply + lane reduction (no 1-wide MXU).
        out_ref[...] = (
            jnp.sum(h * fc_w_ref[...], axis=-1, keepdims=True) + fc_b_ref[0]
        ).astype(out_ref.dtype)

    return kernel


# ----------------------------------------------------------------------------
# Full model forward
# ----------------------------------------------------------------------------
@jax.jit
def lstm_forward(x_bsd, prep):
    """x_bsd: (batch, seq, input_dim) — batch_first like nn.LSTM. Returns (batch, 1)."""
    B, S, D = x_bsd.shape
    layers = prep["layers"]
    L = len(layers)
    H = layers[0][1].shape[0]                         # w_hh_t is (H, 4H)
    assert B % 8 == 0, "batch must be a multiple of 8 (sublane alignment)"
    assert (4 * H) % 128 == 0, "4*hidden must be a multiple of 128 (lane alignment)"

    # time-major + flatten: row (t*B + b) = time t, batch b
    x_flat = jnp.transpose(x_bsd, (1, 0, 2)).reshape(S * B, D)

    args = [x_flat]
    for (w_ih_t, w_hh_t, bias) in layers:
        args += [w_ih_t, w_hh_t, bias]
    args += [prep["fc_w"], prep["fc_b"]]

    vmem = pl.BlockSpec(memory_space=pltpu.MemorySpace.VMEM)
    smem = pl.BlockSpec(memory_space=pltpu.MemorySpace.SMEM)

    return pl.pallas_call(
        _make_fused_lstm_kernel(S, B, H, L),
        out_shape=jax.ShapeDtypeStruct((B, 1), jnp.float32),
        in_specs=[vmem] * (1 + 3 * L) + [vmem, smem],
        out_specs=vmem,
        scratch_shapes=[pltpu.VMEM((S * B, H), jnp.float32)],   # inter-layer sequence
        compiler_params=pltpu.CompilerParams(vmem_limit_bytes=32 * 1024 * 1024),
    )(*args)


# ----------------------------------------------------------------------------
# Parameter init (PyTorch-style uniform(-1/sqrt(H), 1/sqrt(H))), raw layout
# ----------------------------------------------------------------------------
def init_params(key, input_dim, hidden_dim, num_layers):
    k = float(hidden_dim) ** -0.5
    layers = []
    for l in range(num_layers):
        d_in = input_dim if l == 0 else hidden_dim
        key, k1, k2, k3, k4 = jax.random.split(key, 5)
        w_ih = jax.random.uniform(k1, (4 * hidden_dim, d_in), jnp.float32, -k, k)
        w_hh = jax.random.uniform(k2, (4 * hidden_dim, hidden_dim), jnp.float32, -k, k)
        b_ih = jax.random.uniform(k3, (4 * hidden_dim,), jnp.float32, -k, k)
        b_hh = jax.random.uniform(k4, (4 * hidden_dim,), jnp.float32, -k, k)
        layers.append((w_ih, w_hh, b_ih, b_hh))
    key, k5, k6 = jax.random.split(key, 3)
    fc_w = jax.random.uniform(k5, (1, hidden_dim), jnp.float32, -k, k)
    fc_b = jax.random.uniform(k6, (1,), jnp.float32, -k, k)
    return {"layers": layers, "fc_w": fc_w, "fc_b": fc_b}


def prepare_params(raw):
    """Host-side kernel param prep (done once):
      * transpose weights (kernel computes x @ W^T as x @ W_t), fold b_ih + b_hh,
      * pre-scale i/f/o gate rows by 0.5 so ONE tanh recovers all gates
        (sigmoid(a) = 0.5*tanh(a/2) + 0.5; g rows keep scale 1 for tanh(a)),
      * store the recurrent weight in bf16 for a single-pass MXU matmul.
    0.5 is a power of two, so the scaling commutes exactly with the bf16 cast."""
    H = raw["layers"][0][1].shape[1]
    G = 4 * H
    idx = jnp.arange(G)
    scale = jnp.where(jnp.logical_and(idx >= 2 * H, idx < 3 * H), 1.0, 0.5)
    scale = scale.astype(jnp.float32)
    layers = []
    for (w_ih, w_hh, b_ih, b_hh) in raw["layers"]:
        w_ih_t = (w_ih * scale[:, None]).T                        # (d_in, 4H) f32
        w_hh_t = (w_hh * scale[:, None]).T.astype(jnp.bfloat16)   # (H,   4H) bf16
        bias = ((b_ih + b_hh) * scale).reshape(1, G)              # (1,   4H) f32
        layers.append((w_ih_t, w_hh_t, bias))
    return {"layers": layers, "fc_w": raw["fc_w"], "fc_b": raw["fc_b"]}


# ----------------------------------------------------------------------------
# Pure-JAX reference (PyTorch nn.LSTM semantics, eval mode / no dropout)
# ----------------------------------------------------------------------------
def lstm_forward_ref(x_bsd, raw, bf16_recurrence=False):
    """bf16_recurrence=True mimics the kernel's bf16 recurrent-matmul operands
    (tight structural check); False is the exact f32 reference."""
    def maybe_bf16(v):
        return v.astype(jnp.bfloat16).astype(jnp.float32) if bf16_recurrence else v

    x = jnp.transpose(x_bsd, (1, 0, 2))                 # (S, B, D)
    S, B, _ = x.shape
    for (w_ih, w_hh, b_ih, b_hh) in raw["layers"]:
        H = w_hh.shape[1]
        w_ih_t = w_ih.T
        w_hh_t = maybe_bf16(w_hh.T)
        bias = (b_ih + b_hh)[None, :]
        h = jnp.zeros((B, H), jnp.float32)
        c = jnp.zeros((B, H), jnp.float32)
        outs = []
        for t in range(S):
            g = x[t] @ w_ih_t + maybe_bf16(h) @ w_hh_t + bias
            i = jax.nn.sigmoid(g[:, 0:H])
            f = jax.nn.sigmoid(g[:, H:2 * H])
            gg = jnp.tanh(g[:, 2 * H:3 * H])
            o = jax.nn.sigmoid(g[:, 3 * H:4 * H])
            c = f * c + i * gg
            h = o * jnp.tanh(c)
            outs.append(h)
        x = jnp.stack(outs, axis=0)                     # (S, B, H)
    return x[-1] @ raw["fc_w"].T + raw["fc_b"][None, :]


if __name__ == "__main__":
    # batch=8 keeps per-step tiles sublane-dense; H=32 -> 4H=128 = one full vreg row.
    batch, seq, input_dim, hidden_dim, num_layers = 8, 8, 16, 32, 2

    key = jax.random.PRNGKey(0)
    key, kx = jax.random.split(key)
    x = jax.random.normal(kx, (batch, seq, input_dim), jnp.float32)

    raw_params = init_params(key, input_dim, hidden_dim, num_layers)
    kernel_params = prepare_params(raw_params)

    out = lstm_forward(x, kernel_params)
    jax.block_until_ready(out)
    assert out.shape == (batch, 1)

    # Tight structural check vs. a reference using the same bf16 recurrent operands.
    ref_matched = lstm_forward_ref(x, raw_params, bf16_recurrence=True)
    assert jnp.allclose(out, ref_matched, rtol=1e-3, atol=1e-3), (out, ref_matched)

    # Fidelity check vs. the exact f32 PyTorch-semantics LSTM (bf16 rounding slack).
    ref_f32 = lstm_forward_ref(x, raw_params, bf16_recurrence=False)
    assert jnp.allclose(out, ref_f32, rtol=2e-2, atol=2e-2), (out, ref_f32)

    print("KERNEL_OK")
</pallas_src>

<mosaic_0001>
module attributes {stable_mosaic.version = 11 : i64} {
  func.func @kernel(%arg0: memref<64x16xf32, #tpu.memory_space<vmem>>, %arg1: memref<16x128xf32, #tpu.memory_space<vmem>>, %arg2: memref<32x128xbf16, #tpu.memory_space<vmem>>, %arg3: memref<1x128xf32, #tpu.memory_space<vmem>>, %arg4: memref<32x128xf32, #tpu.memory_space<vmem>>, %arg5: memref<32x128xbf16, #tpu.memory_space<vmem>>, %arg6: memref<1x128xf32, #tpu.memory_space<vmem>>, %arg7: memref<1x32xf32, #tpu.memory_space<vmem>>, %arg8: memref<1xf32, #tpu.memory_space<smem>>, %arg9: memref<8x1xf32, #tpu.memory_space<vmem>>, %arg10: memref<64x32xf32, #tpu.memory_space<vmem>>) attributes {dimension_semantics = [], scalar_prefetch = 0 : i64, scratch_operands = 1 : i64, tpu.core_type = #tpu.core_type<tc>} {
    %0 = tpu.iota {dimensions = array<i32: 1>} : vector<1x128xi32>
    %c64_i32 = arith.constant 64 : i32
    %1 = vector.broadcast %c64_i32 : i32 to vector<1x128xi32>
    %2 = arith.cmpi sge, %0, %1 : vector<1x128xi32>
    %c96_i32 = arith.constant 96 : i32
    %3 = vector.broadcast %c96_i32 : i32 to vector<1x128xi32>
    %4 = arith.cmpi slt, %0, %3 : vector<1x128xi32>
    %5 = arith.andi %2, %4 : vector<1x128xi1>
    %cst = arith.constant 1.000000e+00 : f32
    %cst_0 = arith.constant 5.000000e-01 : f32
    %6 = vector.broadcast %cst : f32 to vector<1x128xf32>
    %7 = vector.broadcast %cst_0 : f32 to vector<1x128xf32>
    %8 = arith.select %5, %6, %7 : vector<1x128xi1>, vector<1x128xf32>
    %cst_1 = arith.constant 0.000000e+00 : f32
    %cst_2 = arith.constant 5.000000e-01 : f32
    %9 = vector.broadcast %cst_1 : f32 to vector<1x128xf32>
    %10 = vector.broadcast %cst_2 : f32 to vector<1x128xf32>
    %11 = arith.select %5, %9, %10 : vector<1x128xi1>, vector<1x128xf32>
    %c0 = arith.constant 0 : index
    %c0_3 = arith.constant 0 : index
    %12 = vector.load %arg0[%c0, %c0_3] : memref<64x16xf32, #tpu.memory_space<vmem>>, vector<64x16xf32>
    %c0_4 = arith.constant 0 : index
    %c0_5 = arith.constant 0 : index
    %13 = vector.load %arg1[%c0_4, %c0_5] : memref<16x128xf32, #tpu.memory_space<vmem>>, vector<16x128xf32>
    %c0_6 = arith.constant 0 : index
    %c0_7 = arith.constant 0 : index
    %14 = vector.load %arg2[%c0_6, %c0_7] : memref<32x128xbf16, #tpu.memory_space<vmem>>, vector<32x128xbf16>
    %c0_8 = arith.constant 0 : index
    %c0_9 = arith.constant 0 : index
    %15 = vector.load %arg3[%c0_8, %c0_9] : memref<1x128xf32, #tpu.memory_space<vmem>>, vector<1x128xf32>
    %cst_10 = arith.constant dense<0.000000e+00> : vector<64x128xf32>
    %16 = tpu.matmul %12, %13, %cst_10 {dimension_numbers = #tpu.dot_dimension_numbers<[1], [0], [0], [1], [0, 0, 1, 1], [], []>} : vector<64x16xf32>, vector<16x128xf32>, vector<64x128xf32> -> vector<64x128xf32>
    %17 = vector.broadcast %15 : vector<1x128xf32> to vector<64x128xf32>
    %18 = arith.addf %16, %17 : vector<64x128xf32>
    %cst_11 = arith.constant 0.000000e+00 : f32
    %19 = vector.broadcast %cst_11 : f32 to vector<8x32xf32>
    %cst_12 = arith.constant 0.000000e+00 : f32
    %20 = vector.broadcast %cst_12 : f32 to vector<8x32xf32>
    %21 = vector.extract_strided_slice %18 {offsets = [0, 0], sizes = [8, 128], strides = [1, 1]} : vector<64x128xf32> to vector<8x128xf32>
    %22 = arith.truncf %19 : vector<8x32xf32> to vector<8x32xbf16>
    %cst_13 = arith.constant dense<0.000000e+00> : vector<8x128xf32>
    %23 = tpu.matmul %22, %14, %cst_13 {dimension_numbers = #tpu.dot_dimension_numbers<[1], [0], [0], [1], [0, 0, 1, 1], [], []>} : vector<8x32xbf16>, vector<32x128xbf16>, vector<8x128xf32> -> vector<8x128xf32>
    %24 = arith.addf %21, %23 : vector<8x128xf32>
    %25 = math.tanh %24 : vector<8x128xf32>
    %26 = vector.broadcast %8 : vector<1x128xf32> to vector<8x128xf32>
    %27 = arith.mulf %26, %25 : vector<8x128xf32>
    %28 = vector.broadcast %11 : vector<1x128xf32> to vector<8x128xf32>
    %29 = arith.addf %27, %28 : vector<8x128xf32>
    %30 = vector.extract_strided_slice %29 {offsets = [0, 0], sizes = [8, 32], strides = [1, 1]} : vector<8x128xf32> to vector<8x32xf32>
    %31 = vector.extract_strided_slice %29 {offsets = [0, 32], sizes = [8, 32], strides = [1, 1]} : vector<8x128xf32> to vector<8x32xf32>
    %32 = vector.extract_strided_slice %29 {offsets = [0, 64], sizes = [8, 32], strides = [1, 1]} : vector<8x128xf32> to vector<8x32xf32>
    %33 = vector.extract_strided_slice %29 {offsets = [0, 96], sizes = [8, 32], strides = [1, 1]} : vector<8x128xf32> to vector<8x32xf32>
    %34 = arith.mulf %31, %20 : vector<8x32xf32>
    %35 = arith.mulf %30, %32 : vector<8x32xf32>
    %36 = arith.addf %34, %35 : vector<8x32xf32>
    %37 = math.tanh %36 : vector<8x32xf32>
    %38 = arith.mulf %33, %37 : vector<8x32xf32>
    %c0_14 = arith.constant 0 : index
    %c0_15 = arith.constant 0 : index
    %39 = vector.load %arg10[%c0_14, %c0_15] : memref<64x32xf32, #tpu.memory_space<vmem>>, vector<8x32xf32>
    tpu.vector_store %arg10[%c0_14, %c0_15], %38 {strides = array<i32>} : memref<64x32xf32, #tpu.memory_space<vmem>>, vector<8x32xf32>,
    %40 = vector.extract_strided_slice %18 {offsets = [8, 0], sizes = [8, 128], strides = [1, 1]} : vector<64x128xf32> to vector<8x128xf32>
    %41 = arith.truncf %38 : vector<8x32xf32> to vector<8x32xbf16>
    %cst_16 = arith.constant dense<0.000000e+00> : vector<8x128xf32>
    %42 = tpu.matmul %41, %14, %cst_16 {dimension_numbers = #tpu.dot_dimension_numbers<[1], [0], [0], [1], [0, 0, 1, 1], [], []>} : vector<8x32xbf16>, vector<32x128xbf16>, vector<8x128xf32> -> vector<8x128xf32>
    %43 = arith.addf %40, %42 : vector<8x128xf32>
    %44 = math.tanh %43 : vector<8x128xf32>
    %45 = vector.broadcast %8 : vector<1x128xf32> to vector<8x128xf32>
    %46 = arith.mulf %45, %44 : vector<8x128xf32>
    %47 = vector.broadcast %11 : vector<1x128xf32> to vector<8x128xf32>
    %48 = arith.addf %46, %47 : vector<8x128xf32>
    %49 = vector.extract_strided_slice %48 {offsets = [0, 0], sizes = [8, 32], strides = [1, 1]} : vector<8x128xf32> to vector<8x32xf32>
    %50 = vector.extract_strided_slice %48 {offsets = [0, 32], sizes = [8, 32], strides = [1, 1]} : vector<8x128xf32> to vector<8x32xf32>
    %51 = vector.extract_strided_slice %48 {offsets = [0, 64], sizes = [8, 32], strides = [1, 1]} : vector<8x128xf32> to vector<8x32xf32>
    %52 = vector.extract_strided_slice %48 {offsets = [0, 96], sizes = [8, 32], strides = [1, 1]} : vector<8x128xf32> to vector<8x32xf32>
    %53 = arith.mulf %50, %36 : vector<8x32xf32>
    %54 = arith.mulf %49, %51 : vector<8x32xf32>
    %55 = arith.addf %53, %54 : vector<8x32xf32>
    %56 = math.tanh %55 : vector<8x32xf32>
    %57 = arith.mulf %52, %56 : vector<8x32xf32>
    %c8 = arith.constant 8 : index
    %c0_17 = arith.constant 0 : index
    %58 = vector.load %arg10[%c8, %c0_17] : memref<64x32xf32, #tpu.memory_space<vmem>>, vector<8x32xf32>
    tpu.vector_store %arg10[%c8, %c0_17], %57 {strides = array<i32>} : memref<64x32xf32, #tpu.memory_space<vmem>>, vector<8x32xf32>,
    %59 = vector.extract_strided_slice %18 {offsets = [16, 0], sizes = [8, 128], strides = [1, 1]} : vector<64x128xf32> to vector<8x128xf32>
    %60 = arith.truncf %57 : vector<8x32xf32> to vector<8x32xbf16>
    %cst_18 = arith.constant dense<0.000000e+00> : vector<8x128xf32>
    %61 = tpu.matmul %60, %14, %cst_18 {dimension_numbers = #tpu.dot_dimension_numbers<[1], [0], [0], [1], [0, 0, 1, 1], [], []>} : vector<8x32xbf16>, vector<32x128xbf16>, vector<8x128xf32> -> vector<8x128xf32>
    %62 = arith.addf %59, %61 : vector<8x128xf32>
    %63 = math.tanh %62 : vector<8x128xf32>
    %64 = vector.broadcast %8 : vector<1x128xf32> to vector<8x128xf32>
    %65 = arith.mulf %64, %63 : vector<8x128xf32>
    %66 = vector.broadcast %11 : vector<1x128xf32> to vector<8x128xf32>
    %67 = arith.addf %65, %66 : vector<8x128xf32>
    %68 = vector.extract_strided_slice %67 {offsets = [0, 0], sizes = [8, 32], strides = [1, 1]} : vector<8x128xf32> to vector<8x32xf32>
    %69 = vector.extract_strided_slice %67 {offsets = [0, 32], sizes = [8, 32], strides = [1, 1]} : vector<8x128xf32> to vector<8x32xf32>
    %70 = vector.extract_strided_slice %67 {offsets = [0, 64], sizes = [8, 32], strides = [1, 1]} : vector<8x128xf32> to vector<8x32xf32>
    %71 = vector.extract_strided_slice %67 {offsets = [0, 96], sizes = [8, 32], strides = [1, 1]} : vector<8x128xf32> to vector<8x32xf32>
    %72 = arith.mulf %69, %55 : vector<8x32xf32>
    %73 = arith.mulf %68, %70 : vector<8x32xf32>
    %74 = arith.addf %72, %73 : vector<8x32xf32>
    %75 = math.tanh %74 : vector<8x32xf32>
    %76 = arith.mulf %71, %75 : vector<8x32xf32>
    %c16 = arith.constant 16 : index
    %c0_19 = arith.constant 0 : index
    %77 = vector.load %arg10[%c16, %c0_19] : memref<64x32xf32, #tpu.memory_space<vmem>>, vector<8x32xf32>
    tpu.vector_store %arg10[%c16, %c0_19], %76 {strides = array<i32>} : memref<64x32xf32, #tpu.memory_space<vmem>>, vector<8x32xf32>,
    %78 = vector.extract_strided_slice %18 {offsets = [24, 0], sizes = [8, 128], strides = [1, 1]} : vector<64x128xf32> to vector<8x128xf32>
    %79 = arith.truncf %76 : vector<8x32xf32> to vector<8x32xbf16>
    %cst_20 = arith.constant dense<0.000000e+00> : vector<8x128xf32>
    %80 = tpu.matmul %79, %14, %cst_20 {dimension_numbers = #tpu.dot_dimension_numbers<[1], [0], [0], [1], [0, 0, 1, 1], [], []>} : vector<8x32xbf16>, vector<32x128xbf16>, vector<8x128xf32> -> vector<8x128xf32>
    %81 = arith.addf %78, %80 : vector<8x128xf32>
    %82 = math.tanh %81 : vector<8x128xf32>
    %83 = vector.broadcast %8 : vector<1x128xf32> to vector<8x128xf32>
    %84 = arith.mulf %83, %82 : vector<8x128xf32>
    %85 = vector.broadcast %11 : vector<1x128xf32> to vector<8x128xf32>
    %86 = arith.addf %84, %85 : vector<8x128xf32>
    %87 = vector.extract_strided_slice %86 {offsets = [0, 0], sizes = [8, 32], strides = [1, 1]} : vector<8x128xf32> to vector<8x32xf32>
    %88 = vector.extract_strided_slice %86 {offsets = [0, 32], sizes = [8, 32], strides = [1, 1]} : vector<8x128xf32> to vector<8x32xf32>
    %89 = vector.extract_strided_slice %86 {offsets = [0, 64], sizes = [8, 32], strides = [1, 1]} : vector<8x128xf32> to vector<8x32xf32>
    %90 = vector.extract_strided_slice %86 {offsets = [0, 96], sizes = [8, 32], strides = [1, 1]} : vector<8x128xf32> to vector<8x32xf32>
    %91 = arith.mulf %88, %74 : vector<8x32xf32>
    %92 = arith.mulf %87, %89 : vector<8x32xf32>
    %93 = arith.addf %91, %92 : vector<8x32xf32>
    %94 = math.tanh %93 : vector<8x32xf32>
    %95 = arith.mulf %90, %94 : vector<8x32xf32>
    %c24 = arith.constant 24 : index
    %c0_21 = arith.constant 0 : index
    %96 = vector.load %arg10[%c24, %c0_21] : memref<64x32xf32, #tpu.memory_space<vmem>>, vector<8x32xf32>
    tpu.vector_store %arg10[%c24, %c0_21], %95 {strides = array<i32>} : memref<64x32xf32, #tpu.memory_space<vmem>>, vector<8x32xf32>,
    %97 = vector.extract_strided_slice %18 {offsets = [32, 0], sizes = [8, 128], strides = [1, 1]} : vector<64x128xf32> to vector<8x128xf32>
    %98 = arith.truncf %95 : vector<8x32xf32> to vector<8x32xbf16>
    %cst_22 = arith.constant dense<0.000000e+00> : vector<8x128xf32>
    %99 = tpu.matmul %98, %14, %cst_22 {dimension_numbers = #tpu.dot_dimension_numbers<[1], [0], [0], [1], [0, 0, 1, 1], [], []>} : vector<8x32xbf16>, vector<32x128xbf16>, vector<8x128xf32> -> vector<8x128xf32>
    %100 = arith.addf %97, %99 : vector<8x128xf32>
    %101 = math.tanh %100 : vector<8x128xf32>
    %102 = vector.broadcast %8 : vector<1x128xf32> to vector<8x128xf32>
    %103 = arith.mulf %102, %101 : vector<8x128xf32>
    %104 = vector.broadcast %11 : vector<1x128xf32> to vector<8x128xf32>
    %105 = arith.addf %103, %104 : vector<8x128xf32>
    %106 = vector.extract_strided_slice %105 {offsets = [0, 0], sizes = [8, 32], strides = [1, 1]} : vector<8x128xf32> to vector<8x32xf32>
    %107 = vector.extract_strided_slice %105 {offsets = [0, 32], sizes = [8, 32], strides = [1, 1]} : vector<8x128xf32> to vector<8x32xf32>
    %108 = vector.extract_strided_slice %105 {offsets = [0, 64], sizes = [8, 32], strides = [1, 1]} : vector<8x128xf32> to vector<8x32xf32>
    %109 = vector.extract_strided_slice %105 {offsets = [0, 96], sizes = [8, 32], strides = [1, 1]} : vector<8x128xf32> to vector<8x32xf32>
    %110 = arith.mulf %107, %93 : vector<8x32xf32>
    %111 = arith.mulf %106, %108 : vector<8x32xf32>
    %112 = arith.addf %110, %111 : vector<8x32xf32>
    %113 = math.tanh %112 : vector<8x32xf32>
    %114 = arith.mulf %109, %113 : vector<8x32xf32>
    %c32 = arith.constant 32 : index
    %c0_23 = arith.constant 0 : index
    %115 = vector.load %arg10[%c32, %c0_23] : memref<64x32xf32, #tpu.memory_space<vmem>>, vector<8x32xf32>
    tpu.vector_store %arg10[%c32, %c0_23], %114 {strides = array<i32>} : memref<64x32xf32, #tpu.memory_space<vmem>>, vector<8x32xf32>,
    %116 = vector.extract_strided_slice %18 {offsets = [40, 0], sizes = [8, 128], strides = [1, 1]} : vector<64x128xf32> to vector<8x128xf32>
    %117 = arith.truncf %114 : vector<8x32xf32> to vector<8x32xbf16>
    %cst_24 = arith.constant dense<0.000000e+00> : vector<8x128xf32>
    %118 = tpu.matmul %117, %14, %cst_24 {dimension_numbers = #tpu.dot_dimension_numbers<[1], [0], [0], [1], [0, 0, 1, 1], [], []>} : vector<8x32xbf16>, vector<32x128xbf16>, vector<8x128xf32> -> vector<8x128xf32>
    %119 = arith.addf %116, %118 : vector<8x128xf32>
    %120 = math.tanh %119 : vector<8x128xf32>
    %121 = vector.broadcast %8 : vector<1x128xf32> to vector<8x128xf32>
    %122 = arith.mulf %121, %120 : vector<8x128xf32>
    %123 = vector.broadcast %11 : vector<1x128xf32> to vector<8x128xf32>
    %124 = arith.addf %122, %123 : vector<8x128xf32>
    %125 = vector.extract_strided_slice %124 {offsets = [0, 0], sizes = [8, 32], strides = [1, 1]} : vector<8x128xf32> to vector<8x32xf32>
    %126 = vector.extract_strided_slice %124 {offsets = [0, 32], sizes = [8, 32], strides = [1, 1]} : vector<8x128xf32> to vector<8x32xf32>
    %127 = vector.extract_strided_slice %124 {offsets = [0, 64], sizes = [8, 32], strides = [1, 1]} : vector<8x128xf32> to vector<8x32xf32>
    %128 = vector.extract_strided_slice %124 {offsets = [0, 96], sizes = [8, 32], strides = [1, 1]} : vector<8x128xf32> to vector<8x32xf32>
    %129 = arith.mulf %126, %112 : vector<8x32xf32>
    %130 = arith.mulf %125, %127 : vector<8x32xf32>
    %131 = arith.addf %129, %130 : vector<8x32xf32>
    %132 = math.tanh %131 : vector<8x32xf32>
    %133 = arith.mulf %128, %132 : vector<8x32xf32>
    %c40 = arith.constant 40 : index
    %c0_25 = arith.constant 0 : index
    %134 = vector.load %arg10[%c40, %c0_25] : memref<64x32xf32, #tpu.memory_space<vmem>>, vector<8x32xf32>
    tpu.vector_store %arg10[%c40, %c0_25], %133 {strides = array<i32>} : memref<64x32xf32, #tpu.memory_space<vmem>>, vector<8x32xf32>,
    %135 = vector.extract_strided_slice %18 {offsets = [48, 0], sizes = [8, 128], strides = [1, 1]} : vector<64x128xf32> to vector<8x128xf32>
    %136 = arith.truncf %133 : vector<8x32xf32> to vector<8x32xbf16>
    %cst_26 = arith.constant dense<0.000000e+00> : vector<8x128xf32>
    %137 = tpu.matmul %136, %14, %cst_26 {dimension_numbers = #tpu.dot_dimension_numbers<[1], [0], [0], [1], [0, 0, 1, 1], [], []>} : vector<8x32xbf16>, vector<32x128xbf16>, vector<8x128xf32> -> vector<8x128xf32>
    %138 = arith.addf %135, %137 : vector<8x128xf32>
    %139 = math.tanh %138 : vector<8x128xf32>
    %140 = vector.broadcast %8 : vector<1x128xf32> to vector<8x128xf32>
    %141 = arith.mulf %140, %139 : vector<8x128xf32>
    %142 = vector.broadcast %11 : vector<1x128xf32> to vector<8x128xf32>
    %143 = arith.addf %141, %142 : vector<8x128xf32>
    %144 = vector.extract_strided_slice %143 {offsets = [0, 0], sizes = [8, 32], strides = [1, 1]} : vector<8x128xf32> to vector<8x32xf32>
    %145 = vector.extract_strided_slice %143 {offsets = [0, 32], sizes = [8, 32], strides = [1, 1]} : vector<8x128xf32> to vector<8x32xf32>
    %146 = vector.extract_strided_slice %143 {offsets = [0, 64], sizes = [8, 32], strides = [1, 1]} : vector<8x128xf32> to vector<8x32xf32>
    %147 = vector.extract_strided_slice %143 {offsets = [0, 96], sizes = [8, 32], strides = [1, 1]} : vector<8x128xf32> to vector<8x32xf32>
    %148 = arith.mulf %145, %131 : vector<8x32xf32>
    %149 = arith.mulf %144, %146 : vector<8x32xf32>
    %150 = arith.addf %148, %149 : vector<8x32xf32>
    %151 = math.tanh %150 : vector<8x32xf32>
    %152 = arith.mulf %147, %151 : vector<8x32xf32>
    %c48 = arith.constant 48 : index
    %c0_27 = arith.constant 0 : index
    %153 = vector.load %arg10[%c48, %c0_27] : memref<64x32xf32, #tpu.memory_space<vmem>>, vector<8x32xf32>
    tpu.vector_store %arg10[%c48, %c0_27], %152 {strides = array<i32>} : memref<64x32xf32, #tpu.memory_space<vmem>>, vector<8x32xf32>,
    %154 = vector.extract_strided_slice %18 {offsets = [56, 0], sizes = [8, 128], strides = [1, 1]} : vector<64x128xf32> to vector<8x128xf32>
    %155 = arith.truncf %152 : vector<8x32xf32> to vector<8x32xbf16>
    %cst_28 = arith.constant dense<0.000000e+00> : vector<8x128xf32>
    %156 = tpu.matmul %155, %14, %cst_28 {dimension_numbers = #tpu.dot_dimension_numbers<[1], [0], [0], [1], [0, 0, 1, 1], [], []>} : vector<8x32xbf16>, vector<32x128xbf16>, vector<8x128xf32> -> vector<8x128xf32>
    %157 = arith.addf %154, %156 : vector<8x128xf32>
    %158 = math.tanh %157 : vector<8x128xf32>
    %159 = vector.broadcast %8 : vector<1x128xf32> to vector<8x128xf32>
    %160 = arith.mulf %159, %158 : vector<8x128xf32>
    %161 = vector.broadcast %11 : vector<1x128xf32> to vector<8x128xf32>
    %162 = arith.addf %160, %161 : vector<8x128xf32>
    %163 = vector.extract_strided_slice %162 {offsets = [0, 0], sizes = [8, 32], strides = [1, 1]} : vector<8x128xf32> to vector<8x32xf32>
    %164 = vector.extract_strided_slice %162 {offsets = [0, 32], sizes = [8, 32], strides = [1, 1]} : vector<8x128xf32> to vector<8x32xf32>
    %165 = vector.extract_strided_slice %162 {offsets = [0, 64], sizes = [8, 32], strides = [1, 1]} : vector<8x128xf32> to vector<8x32xf32>
    %166 = vector.extract_strided_slice %162 {offsets = [0, 96], sizes = [8, 32], strides = [1, 1]} : vector<8x128xf32> to vector<8x32xf32>
    %167 = arith.mulf %164, %150 : vector<8x32xf32>
    %168 = arith.mulf %163, %165 : vector<8x32xf32>
    %169 = arith.addf %167, %168 : vector<8x32xf32>
    %170 = math.tanh %169 : vector<8x32xf32>
    %171 = arith.mulf %166, %170 : vector<8x32xf32>
    %c56 = arith.constant 56 : index
    %c0_29 = arith.constant 0 : index
    %172 = vector.load %arg10[%c56, %c0_29] : memref<64x32xf32, #tpu.memory_space<vmem>>, vector<8x32xf32>
    tpu.vector_store %arg10[%c56, %c0_29], %171 {strides = array<i32>} : memref<64x32xf32, #tpu.memory_space<vmem>>, vector<8x32xf32>,
    %c0_30 = arith.constant 0 : index
    %c0_31 = arith.constant 0 : index
    %173 = vector.load %arg10[%c0_30, %c0_31] : memref<64x32xf32, #tpu.memory_space<vmem>>, vector<64x32xf32>
    %c0_32 = arith.constant 0 : index
    %c0_33 = arith.constant 0 : index
    %174 = vector.load %arg4[%c0_32, %c0_33] : memref<32x128xf32, #tpu.memory_space<vmem>>, vector<32x128xf32>
    %c0_34 = arith.constant 0 : index
    %c0_35 = arith.constant 0 : index
    %175 = vector.load %arg5[%c0_34, %c0_35] : memref<32x128xbf16, #tpu.memory_space<vmem>>, vector<32x128xbf16>
    %c0_36 = arith.constant 0 : index
    %c0_37 = arith.constant 0 : index
    %176 = vector.load %arg6[%c0_36, %c0_37] : memref<1x128xf32, #tpu.memory_space<vmem>>, vector<1x128xf32>
    %cst_38 = arith.constant dense<0.000000e+00> : vector<64x128xf32>
    %177 = tpu.matmul %173, %174, %cst_38 {dimension_numbers = #tpu.dot_dimension_numbers<[1], [0], [0], [1], [0, 0, 1, 1], [], []>} : vector<64x32xf32>, vector<32x128xf32>, vector<64x128xf32> -> vector<64x128xf32>
    %178 = vector.broadcast %176 : vector<1x128xf32> to vector<64x128xf32>
    %179 = arith.addf %177, %178 : vector<64x128xf32>
    %cst_39 = arith.constant 0.000000e+00 : f32
    %180 = vector.broadcast %cst_39 : f32 to vector<8x32xf32>
    %cst_40 = arith.constant 0.000000e+00 : f32
    %181 = vector.broadcast %cst_40 : f32 to vector<8x32xf32>
    %182 = vector.extract_strided_slice %179 {offsets = [0, 0], sizes = [8, 128], strides = [1, 1]} : vector<64x128xf32> to vector<8x128xf32>
    %183 = arith.truncf %180 : vector<8x32xf32> to vector<8x32xbf16>
    %cst_41 = arith.constant dense<0.000000e+00> : vector<8x128xf32>
    %184 = tpu.matmul %183, %175, %cst_41 {dimension_numbers = #tpu.dot_dimension_numbers<[1], [0], [0], [1], [0, 0, 1, 1], [], []>} : vector<8x32xbf16>, vector<32x128xbf16>, vector<8x128xf32> -> vector<8x128xf32>
    %185 = arith.addf %182, %184 : vector<8x128xf32>
    %186 = math.tanh %185 : vector<8x128xf32>
    %187 = vector.broadcast %8 : vector<1x128xf32> to vector<8x128xf32>
    %188 = arith.mulf %187, %186 : vector<8x128xf32>
    %189 = vector.broadcast %11 : vector<1x128xf32> to vector<8x128xf32>
    %190 = arith.addf %188, %189 : vector<8x128xf32>
    %191 = vector.extract_strided_slice %190 {offsets = [0, 0], sizes = [8, 32], strides = [1, 1]} : vector<8x128xf32> to vector<8x32xf32>
    %192 = vector.extract_strided_slice %190 {offsets = [0, 32], sizes = [8, 32], strides = [1, 1]} : vector<8x128xf32> to vector<8x32xf32>
    %193 = vector.extract_strided_slice %190 {offsets = [0, 64], sizes = [8, 32], strides = [1, 1]} : vector<8x128xf32> to vector<8x32xf32>
    %194 = vector.extract_strided_slice %190 {offsets = [0, 96], sizes = [8, 32], strides = [1, 1]} : vector<8x128xf32> to vector<8x32xf32>
    %195 = arith.mulf %192, %181 : vector<8x32xf32>
    %196 = arith.mulf %191, %193 : vector<8x32xf32>
    %197 = arith.addf %195, %196 : vector<8x32xf32>
    %198 = math.tanh %197 : vector<8x32xf32>
    %199 = arith.mulf %194, %198 : vector<8x32xf32>
    %200 = vector.extract_strided_slice %179 {offsets = [8, 0], sizes = [8, 128], strides = [1, 1]} : vector<64x128xf32> to vector<8x128xf32>
    %201 = arith.truncf %199 : vector<8x32xf32> to vector<8x32xbf16>
    %cst_42 = arith.constant dense<0.000000e+00> : vector<8x128xf32>
    %202 = tpu.matmul %201, %175, %cst_42 {dimension_numbers = #tpu.dot_dimension_numbers<[1], [0], [0], [1], [0, 0, 1, 1], [], []>} : vector<8x32xbf16>, vector<32x128xbf16>, vector<8x128xf32> -> vector<8x128xf32>
    %203 = arith.addf %200, %202 : vector<8x128xf32>
    %204 = math.tanh %203 : vector<8x128xf32>
    %205 = vector.broadcast %8 : vector<1x128xf32> to vector<8x128xf32>
    %206 = arith.mulf %205, %204 : vector<8x128xf32>
    %207 = vector.broadcast %11 : vector<1x128xf32> to vector<8x128xf32>
    %208 = arith.addf %206, %207 : vector<8x128xf32>
    %209 = vector.extract_strided_slice %208 {offsets = [0, 0], sizes = [8, 32], strides = [1, 1]} : vector<8x128xf32> to vector<8x32xf32>
    %210 = vector.extract_strided_slice %208 {offsets = [0, 32], sizes = [8, 32], strides = [1, 1]} : vector<8x128xf32> to vector<8x32xf32>
    %211 = vector.extract_strided_slice %208 {offsets = [0, 64], sizes = [8, 32], strides = [1, 1]} : vector<8x128xf32> to vector<8x32xf32>
    %212 = vector.extract_strided_slice %208 {offsets = [0, 96], sizes = [8, 32], strides = [1, 1]} : vector<8x128xf32> to vector<8x32xf32>
    %213 = arith.mulf %210, %197 : vector<8x32xf32>
    %214 = arith.mulf %209, %211 : vector<8x32xf32>
    %215 = arith.addf %213, %214 : vector<8x32xf32>
    %216 = math.tanh %215 : vector<8x32xf32>
    %217 = arith.mulf %212, %216 : vector<8x32xf32>
    %218 = vector.extract_strided_slice %179 {offsets = [16, 0], sizes = [8, 128], strides = [1, 1]} : vector<64x128xf32> to vector<8x128xf32>
    %219 = arith.truncf %217 : vector<8x32xf32> to vector<8x32xbf16>
    %cst_43 = arith.constant dense<0.000000e+00> : vector<8x128xf32>
    %220 = tpu.matmul %219, %175, %cst_43 {dimension_numbers = #tpu.dot_dimension_numbers<[1], [0], [0], [1], [0, 0, 1, 1], [], []>} : vector<8x32xbf16>, vector<32x128xbf16>, vector<8x128xf32> -> vector<8x128xf32>
    %221 = arith.addf %218, %220 : vector<8x128xf32>
    %222 = math.tanh %221 : vector<8x128xf32>
    %223 = vector.broadcast %8 : vector<1x128xf32> to vector<8x128xf32>
    %224 = arith.mulf %223, %222 : vector<8x128xf32>
    %225 = vector.broadcast %11 : vector<1x128xf32> to vector<8x128xf32>
    %226 = arith.addf %224, %225 : vector<8x128xf32>
    %227 = vector.extract_strided_slice %226 {offsets = [0, 0], sizes = [8, 32], strides = [1, 1]} : vector<8x128xf32> to vector<8x32xf32>
    %228 = vector.extract_strided_slice %226 {offsets = [0, 32], sizes = [8, 32], strides = [1, 1]} : vector<8x128xf32> to vector<8x32xf32>
    %229 = vector.extract_strided_slice %226 {offsets = [0, 64], sizes = [8, 32], strides = [1, 1]} : vector<8x128xf32> to vector<8x32xf32>
    %230 = vector.extract_strided_slice %226 {offsets = [0, 96], sizes = [8, 32], strides = [1, 1]} : vector<8x128xf32> to vector<8x32xf32>
    %231 = arith.mulf %228, %215 : vector<8x32xf32>
    %232 = arith.mulf %227, %229 : vector<8x32xf32>
    %233 = arith.addf %231, %232 : vector<8x32xf32>
    %234 = math.tanh %233 : vector<8x32xf32>
    %235 = arith.mulf %230, %234 : vector<8x32xf32>
    %236 = vector.extract_strided_slice %179 {offsets = [24, 0], sizes = [8, 128], strides = [1, 1]} : vector<64x128xf32> to vector<8x128xf32>
    %237 = arith.truncf %235 : vector<8x32xf32> to vector<8x32xbf16>
    %cst_44 = arith.constant dense<0.000000e+00> : vector<8x128xf32>
    %238 = tpu.matmul %237, %175, %cst_44 {dimension_numbers = #tpu.dot_dimension_numbers<[1], [0], [0], [1], [0, 0, 1, 1], [], []>} : vector<8x32xbf16>, vector<32x128xbf16>, vector<8x128xf32> -> vector<8x128xf32>
    %239 = arith.addf %236, %238 : vector<8x128xf32>
    %240 = math.tanh %239 : vector<8x128xf32>
    %241 = vector.broadcast %8 : vector<1x128xf32> to vector<8x128xf32>
    %242 = arith.mulf %241, %240 : vector<8x128xf32>
    %243 = vector.broadcast %11 : vector<1x128xf32> to vector<8x128xf32>
    %244 = arith.addf %242, %243 : vector<8x128xf32>
    %245 = vector.extract_strided_slice %244 {offsets = [0, 0], sizes = [8, 32], strides = [1, 1]} : vector<8x128xf32> to vector<8x32xf32>
    %246 = vector.extract_strided_slice %244 {offsets = [0, 32], sizes = [8, 32], strides = [1, 1]} : vector<8x128xf32> to vector<8x32xf32>
    %247 = vector.extract_strided_slice %244 {offsets = [0, 64], sizes = [8, 32], strides = [1, 1]} : vector<8x128xf32> to vector<8x32xf32>
    %248 = vector.extract_strided_slice %244 {offsets = [0, 96], sizes = [8, 32], strides = [1, 1]} : vector<8x128xf32> to vector<8x32xf32>
    %249 = arith.mulf %246, %233 : vector<8x32xf32>
    %250 = arith.mulf %245, %247 : vector<8x32xf32>
    %251 = arith.addf %249, %250 : vector<8x32xf32>
    %252 = math.tanh %251 : vector<8x32xf32>
    %253 = arith.mulf %248, %252 : vector<8x32xf32>
    %254 = vector.extract_strided_slice %179 {offsets = [32, 0], sizes = [8, 128], strides = [1, 1]} : vector<64x128xf32> to vector<8x128xf32>
    %255 = arith.truncf %253 : vector<8x32xf32> to vector<8x32xbf16>
    %cst_45 = arith.constant dense<0.000000e+00> : vector<8x128xf32>
    %256 = tpu.matmul %255, %175, %cst_45 {dimension_numbers = #tpu.dot_dimension_numbers<[1], [0], [0], [1], [0, 0, 1, 1], [], []>} : vector<8x32xbf16>, vector<32x128xbf16>, vector<8x128xf32> -> vector<8x128xf32>
    %257 = arith.addf %254, %256 : vector<8x128xf32>
    %258 = math.tanh %257 : vector<8x128xf32>
    %259 = vector.broadcast %8 : vector<1x128xf32> to vector<8x128xf32>
    %260 = arith.mulf %259, %258 : vector<8x128xf32>
    %261 = vector.broadcast %11 : vector<1x128xf32> to vector<8x128xf32>
    %262 = arith.addf %260, %261 : vector<8x128xf32>
    %263 = vector.extract_strided_slice %262 {offsets = [0, 0], sizes = [8, 32], strides = [1, 1]} : vector<8x128xf32> to vector<8x32xf32>
    %264 = vector.extract_strided_slice %262 {offsets = [0, 32], sizes = [8, 32], strides = [1, 1]} : vector<8x128xf32> to vector<8x32xf32>
    %265 = vector.extract_strided_slice %262 {offsets = [0, 64], sizes = [8, 32], strides = [1, 1]} : vector<8x128xf32> to vector<8x32xf32>
    %266 = vector.extract_strided_slice %262 {offsets = [0, 96], sizes = [8, 32], strides = [1, 1]} : vector<8x128xf32> to vector<8x32xf32>
    %267 = arith.mulf %264, %251 : vector<8x32xf32>
    %268 = arith.mulf %263, %265 : vector<8x32xf32>
    %269 = arith.addf %267, %268 : vector<8x32xf32>
    %270 = math.tanh %269 : vector<8x32xf32>
    %271 = arith.mulf %266, %270 : vector<8x32xf32>
    %272 = vector.extract_strided_slice %179 {offsets = [40, 0], sizes = [8, 128], strides = [1, 1]} : vector<64x128xf32> to vector<8x128xf32>
    %273 = arith.truncf %271 : vector<8x32xf32> to vector<8x32xbf16>
    %cst_46 = arith.constant dense<0.000000e+00> : vector<8x128xf32>
    %274 = tpu.matmul %273, %175, %cst_46 {dimension_numbers = #tpu.dot_dimension_numbers<[1], [0], [0], [1], [0, 0, 1, 1], [], []>} : vector<8x32xbf16>, vector<32x128xbf16>, vector<8x128xf32> -> vector<8x128xf32>
    %275 = arith.addf %272, %274 : vector<8x128xf32>
    %276 = math.tanh %275 : vector<8x128xf32>
    %277 = vector.broadcast %8 : vector<1x128xf32> to vector<8x128xf32>
    %278 = arith.mulf %277, %276 : vector<8x128xf32>
    %279 = vector.broadcast %11 : vector<1x128xf32> to vector<8x128xf32>
    %280 = arith.addf %278, %279 : vector<8x128xf32>
    %281 = vector.extract_strided_slice %280 {offsets = [0, 0], sizes = [8, 32], strides = [1, 1]} : vector<8x128xf32> to vector<8x32xf32>
    %282 = vector.extract_strided_slice %280 {offsets = [0, 32], sizes = [8, 32], strides = [1, 1]} : vector<8x128xf32> to vector<8x32xf32>
    %283 = vector.extract_strided_slice %280 {offsets = [0, 64], sizes = [8, 32], strides = [1, 1]} : vector<8x128xf32> to vector<8x32xf32>
    %284 = vector.extract_strided_slice %280 {offsets = [0, 96], sizes = [8, 32], strides = [1, 1]} : vector<8x128xf32> to vector<8x32xf32>
    %285 = arith.mulf %282, %269 : vector<8x32xf32>
    %286 = arith.mulf %281, %283 : vector<8x32xf32>
    %287 = arith.addf %285, %286 : vector<8x32xf32>
    %288 = math.tanh %287 : vector<8x32xf32>
    %289 = arith.mulf %284, %288 : vector<8x32xf32>
    %290 = vector.extract_strided_slice %179 {offsets = [48, 0], sizes = [8, 128], strides = [1, 1]} : vector<64x128xf32> to vector<8x128xf32>
    %291 = arith.truncf %289 : vector<8x32xf32> to vector<8x32xbf16>
    %cst_47 = arith.constant dense<0.000000e+00> : vector<8x128xf32>
    %292 = tpu.matmul %291, %175, %cst_47 {dimension_numbers = #tpu.dot_dimension_numbers<[1], [0], [0], [1], [0, 0, 1, 1], [], []>} : vector<8x32xbf16>, vector<32x128xbf16>, vector<8x128xf32> -> vector<8x128xf32>
    %293 = arith.addf %290, %292 : vector<8x128xf32>
    %294 = math.tanh %293 : vector<8x128xf32>
    %295 = vector.broadcast %8 : vector<1x128xf32> to vector<8x128xf32>
    %296 = arith.mulf %295, %294 : vector<8x128xf32>
    %297 = vector.broadcast %11 : vector<1x128xf32> to vector<8x128xf32>
    %298 = arith.addf %296, %297 : vector<8x128xf32>
    %299 = vector.extract_strided_slice %298 {offsets = [0, 0], sizes = [8, 32], strides = [1, 1]} : vector<8x128xf32> to vector<8x32xf32>
    %300 = vector.extract_strided_slice %298 {offsets = [0, 32], sizes = [8, 32], strides = [1, 1]} : vector<8x128xf32> to vector<8x32xf32>
    %301 = vector.extract_strided_slice %298 {offsets = [0, 64], sizes = [8, 32], strides = [1, 1]} : vector<8x128xf32> to vector<8x32xf32>
    %302 = vector.extract_strided_slice %298 {offsets = [0, 96], sizes = [8, 32], strides = [1, 1]} : vector<8x128xf32> to vector<8x32xf32>
    %303 = arith.mulf %300, %287 : vector<8x32xf32>
    %304 = arith.mulf %299, %301 : vector<8x32xf32>
    %305 = arith.addf %303, %304 : vector<8x32xf32>
    %306 = math.tanh %305 : vector<8x32xf32>
    %307 = arith.mulf %302, %306 : vector<8x32xf32>
    %308 = vector.extract_strided_slice %179 {offsets = [56, 0], sizes = [8, 128], strides = [1, 1]} : vector<64x128xf32> to vector<8x128xf32>
    %309 = arith.truncf %307 : vector<8x32xf32> to vector<8x32xbf16>
    %cst_48 = arith.constant dense<0.000000e+00> : vector<8x128xf32>
    %310 = tpu.matmul %309, %175, %cst_48 {dimension_numbers = #tpu.dot_dimension_numbers<[1], [0], [0], [1], [0, 0, 1, 1], [], []>} : vector<8x32xbf16>, vector<32x128xbf16>, vector<8x128xf32> -> vector<8x128xf32>
    %311 = arith.addf %308, %310 : vector<8x128xf32>
    %312 = math.tanh %311 : vector<8x128xf32>
    %313 = vector.broadcast %8 : vector<1x128xf32> to vector<8x128xf32>
    %314 = arith.mulf %313, %312 : vector<8x128xf32>
    %315 = vector.broadcast %11 : vector<1x128xf32> to vector<8x128xf32>
    %316 = arith.addf %314, %315 : vector<8x128xf32>
    %317 = vector.extract_strided_slice %316 {offsets = [0, 0], sizes = [8, 32], strides = [1, 1]} : vector<8x128xf32> to vector<8x32xf32>
    %318 = vector.extract_strided_slice %316 {offsets = [0, 32], sizes = [8, 32], strides = [1, 1]} : vector<8x128xf32> to vector<8x32xf32>
    %319 = vector.extract_strided_slice %316 {offsets = [0, 64], sizes = [8, 32], strides = [1, 1]} : vector<8x128xf32> to vector<8x32xf32>
    %320 = vector.extract_strided_slice %316 {offsets = [0, 96], sizes = [8, 32], strides = [1, 1]} : vector<8x128xf32> to vector<8x32xf32>
    %321 = arith.mulf %318, %305 : vector<8x32xf32>
    %322 = arith.mulf %317, %319 : vector<8x32xf32>
    %323 = arith.addf %321, %322 : vector<8x32xf32>
    %324 = math.tanh %323 : vector<8x32xf32>
    %325 = arith.mulf %320, %324 : vector<8x32xf32>
    %c0_49 = arith.constant 0 : index
    %c0_50 = arith.constant 0 : index
    %326 = vector.load %arg7[%c0_49, %c0_50] : memref<1x32xf32, #tpu.memory_space<vmem>>, vector<1x32xf32>
    %327 = vector.broadcast %326 : vector<1x32xf32> to vector<8x32xf32>
    %328 = arith.mulf %325, %327 : vector<8x32xf32>
    %cst_51 = arith.constant dense<0.000000e+00> : vector<8xf32>
    %329 = vector.multi_reduction <add>, %328, %cst_51 [1] : vector<8x32xf32> to vector<8xf32>
    %330 = vector.shape_cast %329 : vector<8xf32> to vector<8x1xf32>
    %c0_52 = arith.constant 0 : index
    %331 = memref.load %arg8[%c0_52] : memref<1xf32, #tpu.memory_space<smem>>
    %332 = vector.broadcast %331 : f32 to vector<8x1xf32>
    %333 = arith.addf %330, %332 : vector<8x1xf32>
    %c0_53 = arith.constant 0 : index
    %c0_54 = arith.constant 0 : index
    %334 = vector.load %arg9[%c0_53, %c0_54] : memref<8x1xf32, #tpu.memory_space<vmem>>, vector<8x1xf32>
    tpu.vector_store %arg9[%c0_53, %c0_54], %333 {strides = array<i32>} : memref<8x1xf32, #tpu.memory_space<vmem>>, vector<8x1xf32>,
    return
  }
}

</mosaic_0001>

<llo_original>
// kernel: lstm_forward.1
$region0: #{lstm_forward.1}
  #allocation0 [shape = 'u32[]', space=smem, size = 0x4, offset = 0x4, fixed_abs, tag = 'smem constant byte address 0x4 - core index']
  #allocation1 [shape = 'u32[144,128]{1,0:T(1,128)}', space=vmem, size = 0x12000, scoped, tag = 'internal scratch']
  #allocation2 [shape = 'f32[64,32]{1,0:T(8,128)}', space=vmem, size = 0x8000, scoped, tag = 'scratch operand']
  #allocation3 [shape = 'f32[1]{0:T(128)S(6)}', space=smem, size = 0x200, scoped, tag = 'scoped memory for lstm_forward.1']
  %s0 = inlined_call_operand.vmem [shape: f32[64,16], index: 0, kind: input, shape index: {}]
  %s1 = inlined_call_operand.vmem [shape: f32[16,128], index: 1, kind: input, shape index: {}]
  %s2 = inlined_call_operand.vmem [shape: bf16[32,128], index: 2, kind: input, shape index: {}]
  %s3 = inlined_call_operand.vmem [shape: f32[1,128], index: 3, kind: input, shape index: {}]
  %s4 = inlined_call_operand.vmem [shape: f32[32,128], index: 4, kind: input, shape index: {}]
  %s5 = inlined_call_operand.vmem [shape: bf16[32,128], index: 5, kind: input, shape index: {}]
  %s6 = inlined_call_operand.vmem [shape: f32[1,128], index: 6, kind: input, shape index: {}]
  %s7 = inlined_call_operand.vmem [shape: f32[1,32], index: 7, kind: input, shape index: {}]
  %s8 = inlined_call_operand.<no memory space> [shape: f32[1], index: 8, kind: input, shape index: {}]
  %s9 = inlined_call_operand.vmem [shape: f32[8,1], index: 9, kind: output, shape index: {}]
  %s10 = sld [smem:[#allocation0]]
  $region46: #{lstm_forward.1} parent=0
    _
  %s12 = ssub.s32 1, %s10
  %s13 = scalar_select 0, %s12, %s10
  %14 = sst [smem:[#allocation3]] %s8
  // Predicated region
  $region2: #{lstm_forward.1} parent=0 // pred_check
    _
  $region3: #{lstm_forward.1} parent=0 // pred_check_branch
    %16 = sbr.rel (0) target = $region5
  $region4: #{lstm_forward.1} parent=0 // pred_region
    _
  $region5: #{lstm_forward.1} parent=0 // pred_fallthru
    _
  // Predicated region
  $region6: #{lstm_forward.1} parent=0 // pred_check
    _
  $region7: #{lstm_forward.1} parent=0 // pred_check_branch
    %18 = sbr.rel (0) target = $region9
  $region8: #{lstm_forward.1} parent=0 // pred_region
    _
  $region9: #{lstm_forward.1} parent=0 // pred_fallthru
    _
  // Predicated region
  $region10: #{lstm_forward.1} parent=0 // pred_check
    _
  $region11: #{lstm_forward.1} parent=0 // pred_check_branch
    %20 = sbr.rel (0) target = $region13
  $region12: #{lstm_forward.1} parent=0 // pred_region
    _
  $region13: #{lstm_forward.1} parent=0 // pred_fallthru
    _
  // Predicated region
  $region14: #{lstm_forward.1} parent=0 // pred_check
    _
  $region15: #{lstm_forward.1} parent=0 // pred_check_branch
    %22 = sbr.rel (0) target = $region17
  $region16: #{lstm_forward.1} parent=0 // pred_region
    _
  $region17: #{lstm_forward.1} parent=0 // pred_fallthru
    _
  // Predicated region
  $region18: #{lstm_forward.1} parent=0 // pred_check
    _
  $region19: #{lstm_forward.1} parent=0 // pred_check_branch
    %24 = sbr.rel (0) target = $region21
  $region20: #{lstm_forward.1} parent=0 // pred_region
    _
  $region21: #{lstm_forward.1} parent=0 // pred_fallthru
    _
  // Predicated region
  $region22: #{lstm_forward.1} parent=0 // pred_check
    _
  $region23: #{lstm_forward.1} parent=0 // pred_check_branch
    %26 = sbr.rel (0) target = $region25
  $region24: #{lstm_forward.1} parent=0 // pred_region
    _
  $region25: #{lstm_forward.1} parent=0 // pred_fallthru
    _
  // Predicated region
  $region26: #{lstm_forward.1} parent=0 // pred_check
    _
  $region27: #{lstm_forward.1} parent=0 // pred_check_branch
    %28 = sbr.rel (0) target = $region29
  $region28: #{lstm_forward.1} parent=0 // pred_region
    _
  $region29: #{lstm_forward.1} parent=0 // pred_fallthru
    _
  // Predicated region
  $region30: #{lstm_forward.1} parent=0 // pred_check
    _
  $region31: #{lstm_forward.1} parent=0 // pred_check_branch
    %30 = sbr.rel (0) target = $region33
  $region32: #{lstm_forward.1} parent=0 // pred_region
    _
  $region33: #{lstm_forward.1} parent=0 // pred_fallthru
    _
  // Predicated region
  $region34: #{lstm_forward.1} parent=0 // pred_check
    _
  $region35: #{lstm_forward.1} parent=0 // pred_check_branch
    %32 = sbr.rel (0) target = $region37
  $region36: #{lstm_forward.1} parent=0 // pred_region
    _
  $region37: #{lstm_forward.1} parent=0 // pred_fallthru
    _
  %v34 = vlaneseq
  %v35 = vand.u32 %v34, 127
  %vm36 = vcmp.ge.s32.totalorder %v35, 64
  %vm37 = vcmp.lt.s32.totalorder %v35, 96
  %vm38 = vmand %vm36, %vm37
  %v39 = vsel %vm38, 1.0, 0.5
  %v40 = vsel %vm38, 0.0, 0.5
  %v41 = vld [vmem:[%s0] sm:$0xff]
  %v42 = vld [vmem:[%s0 + $0x8] sm:$0xff]
  %v43 = vld [vmem:[%s0 + $0x10] sm:$0xff]
  %v44 = vld [vmem:[%s0 + $0x18] sm:$0xff]
  %v45 = vld [vmem:[%s0 + $0x20] sm:$0xff]
  %v46 = vld [vmem:[%s0 + $0x28] sm:$0xff]
  %v47 = vld [vmem:[%s0 + $0x30] sm:$0xff]
  %v48 = vld [vmem:[%s0 + $0x38] sm:$0xff]
  %v49 = vld [vmem:[%s1] sm:$0xff]
  %v50 = vld [vmem:[%s1 + $0x8] sm:$0xff]
  %v51 = vld [vmem:[%s2] sm:$0xf]
  %v52 = vld [vmem:[%s2 + $0x4] sm:$0xf]
  %v53 = vld [vmem:[%s2 + $0x8] sm:$0xf]
  %v54 = vld [vmem:[%s2 + $0xc] sm:$0xf]
  %v55 = vld [vmem:[%s3] sm:$0x1]
  %v57 = vlaneseq
  %v58 = vshrl.u32 %v57, 7
  %v59 = vsub.s32 0, %v58
  %v60 = vrot.slane %v55, %v59
  %vm62 = vcmask 130048
  %v64 = vsel %vm62, %v41, 0
  %v67 = vsel %vm62, %v42, 0
  %v70 = vsel %vm62, %v43, 0
  %v73 = vsel %vm62, %v44, 0
  %v76 = vsel %vm62, %v45, 0
  %v79 = vsel %vm62, %v46, 0
  %v82 = vsel %vm62, %v47, 0
  %v85 = vsel %vm62, %v48, 0
  %87 = vmatprep.subr.mxu0 0.0
  %88 = vmatpush1.msra.mxu0 %v49
  %89 = vmatprep.subr.mxu0 0.0
  %90 = vmatpush1.msra.mxu0 %v50
  %91 = vmatprep.subr.mxu0 0.0
  %92 = vmatpush1.msra.mxu0 0.0
  %93 = vmatprep.subr.mxu0 0.0
  %94 = vmatpush1.msra.mxu0 0.0
  %95 = vmatprep.subr.mxu0 0.0
  %96 = vmatpush1.msra.mxu0 0.0
  %97 = vmatprep.subr.mxu0 0.0
  %98 = vmatpush1.msra.mxu0 0.0
  %99 = vmatprep.subr.mxu0 0.0
  %100 = vmatpush1.msra.mxu0 0.0
  %101 = vmatprep.subr.mxu0 0.0
  %102 = vmatpush1.msra.mxu0 0.0
  %103 = vmatprep.subr.mxu0 0.0
  %104 = vmatpush1.msra.mxu0 0.0
  %105 = vmatprep.subr.mxu0 0.0
  %106 = vmatpush1.msra.mxu0 0.0
  %107 = vmatprep.subr.mxu0 0.0
  %108 = vmatpush1.msra.mxu0 0.0
  %109 = vmatprep.subr.mxu0 0.0
  %110 = vmatpush1.msra.mxu0 0.0
  %111 = vmatprep.subr.mxu0 0.0
  %112 = vmatpush1.msra.mxu0 0.0
  %113 = vmatprep.subr.mxu0 0.0
  %114 = vmatpush1.msra.mxu0 0.0
  %115 = vmatprep.subr.mxu0 0.0
  %116 = vmatpush1.msra.mxu0 0.0
  %117 = vmatprep.subr.mxu0 0.0
  %118 = vmatpush1.msra.mxu0 0.0
  %119 = vmatprep.subr.mxu0 0.0
  %120 = vmatpush1.msra.mxu0 0.0
  %121 = vmatprep.subr.mxu0 0.0
  %122 = vmatpush1.msra.mxu0 0.0
  %123 = vmatprep.subr.mxu0 0.0
  %124 = vmatpush1.msra.mxu0 0.0
  %125 = vmatprep.subr.mxu0 0.0
  %126 = vmatpush1.msra.mxu0 0.0
  %127 = vmatprep.subr.mxu0 0.0
  %128 = vmatpush1.msra.mxu0 0.0
  %129 = vmatprep.subr.mxu0 0.0
  %130 = vmatpush1.msra.mxu0 0.0
  %131 = vmatprep.subr.mxu0 0.0
  %132 = vmatpush1.msra.mxu0 0.0
  %133 = vmatprep.subr.mxu0 0.0
  %134 = vmatpush1.msra.mxu0 0.0
  %135 = vmatprep.subr.mxu0 0.0
  %136 = vmatpush1.msra.mxu0 0.0
  %137 = vmatprep.subr.mxu0 0.0
  %138 = vmatpush1.msra.mxu0 0.0
  %139 = vmatprep.subr.mxu0 0.0
  %140 = vmatpush1.msra.mxu0 0.0
  %141 = vmatprep.subr.mxu0 0.0
  %142 = vmatpush1.msra.mxu0 0.0
  %143 = vmatprep.subr.mxu0 0.0
  %144 = vmatpush1.msra.mxu0 0.0
  %145 = vmatprep.subr.mxu0 0.0
  %146 = vmatpush1.msra.mxu0 0.0
  %147 = vmatprep.subr.mxu0 0.0
  %148 = vmatpush1.msra.mxu0 0.0
  %149 = vmatprep.subr.mxu0 0.0
  %150 = vmatpush1.msra.mxu0 0.0
  %151 = vmatprep.mubr.f32.mxu0 0.0
  %152 = vmatmul.mubr.f32.gmra.mrb[0].mxu0 %v64
  %v153 = vpop.f32.mrb[0].mxu0
  %v154 = vadd.f32 %v60, %v153
  %v155 = vpop.f32.mrb[0].mxu0
  %156 = vmatprep.mubr.f32.mxu0 0.0
  %157 = vmatmul.mubr.f32.gmra.mrb[0].mxu0 %v67
  %v158 = vpop.f32.mrb[0].mxu0
  %v159 = vadd.f32 %v60, %v158
  %v160 = vpop.f32.mrb[0].mxu0
  %161 = vmatprep.mubr.f32.mxu0 0.0
  %162 = vmatmul.mubr.f32.gmra.mrb[0].mxu0 %v70
  %v163 = vpop.f32.mrb[0].mxu0
  %v164 = vadd.f32 %v60, %v163
  %v165 = vpop.f32.mrb[0].mxu0
  %166 = vmatprep.mubr.f32.mxu0 0.0
  %167 = vmatmul.mubr.f32.gmra.mrb[0].mxu0 %v73
  %v168 = vpop.f32.mrb[0].mxu0
  %v169 = vadd.f32 %v60, %v168
  %v170 = vpop.f32.mrb[0].mxu0
  %171 = vmatprep.mubr.f32.mxu0 0.0
  %172 = vmatmul.mubr.f32.gmra.mrb[0].mxu0 %v76
  %v173 = vpop.f32.mrb[0].mxu0
  %v174 = vadd.f32 %v60, %v173
  %v175 = vpop.f32.mrb[0].mxu0
  %176 = vmatprep.mubr.f32.mxu0 0.0
  %177 = vmatmul.mubr.f32.gmra.mrb[0].mxu0 %v79
  %v178 = vpop.f32.mrb[0].mxu0
  %v179 = vadd.f32 %v60, %v178
  %v180 = vpop.f32.mrb[0].mxu0
  %181 = vmatprep.mubr.f32.mxu0 0.0
  %182 = vmatmul.mubr.f32.gmra.mrb[0].mxu0 %v82
  %v183 = vpop.f32.mrb[0].mxu0
  %v184 = vadd.f32 %v60, %v183
  %v185 = vpop.f32.mrb[0].mxu0
  %186 = vmatprep.mubr.f32.mxu0 0.0
  %187 = vmatmul.mubr.f32.gmra.mrb[0].mxu0 %v85
  %v188 = vpop.f32.mrb[0].mxu0
  %v189 = vadd.f32 %v60, %v188
  %v190 = vpop.f32.mrb[0].mxu0
  %191 = vdwg.mxu0
  %v196 = vunpack.c.l.b16 %v51
  %v197 = vunpack.c.l.b16 %v52
  %v198 = vunpack.c.l.b16 %v53
  %v199 = vunpack.c.l.b16 %v54
  %v200 = vpack.c.b16 %v197, %v196
  %v201 = vpack.c.b16 %v199, %v198
  %vm204 = vcmask 261120
  %v206 = vsel %vm204, 0, 0
  %208 = vmatprep.subr.bf16.mxu0 0
  %209 = vmatpush1.bf16.msra.mxu0 %v200
  %210 = vmatprep.subr.bf16.mxu0 0
  %211 = vmatpush1.bf16.msra.mxu0 %v201
  %212 = vmatprep.subr.bf16.mxu0 0
  %213 = vmatpush1.bf16.msra.mxu0 0
  %214 = vmatprep.subr.bf16.mxu0 0
  %215 = vmatpush1.bf16.msra.mxu0 0
  %216 = vmatprep.subr.bf16.mxu0 0
  %217 = vmatpush1.bf16.msra.mxu0 0
  %218 = vmatprep.subr.bf16.mxu0 0
  %219 = vmatpush1.bf16.msra.mxu0 0
  %220 = vmatprep.subr.bf16.mxu0 0
  %221 = vmatpush1.bf16.msra.mxu0 0
  %222 = vmatprep.subr.bf16.mxu0 0
  %223 = vmatpush1.bf16.msra.mxu0 0
  %224 = vmatprep.subr.bf16.mxu0 0
  %225 = vmatpush1.bf16.msra.mxu0 0
  %226 = vmatprep.subr.bf16.mxu0 0
  %227 = vmatpush1.bf16.msra.mxu0 0
  %228 = vmatprep.subr.bf16.mxu0 0
  %229 = vmatpush1.bf16.msra.mxu0 0
  %230 = vmatprep.subr.bf16.mxu0 0
  %231 = vmatpush1.bf16.msra.mxu0 0
  %232 = vmatprep.subr.bf16.mxu0 0
  %233 = vmatpush1.bf16.msra.mxu0 0
  %234 = vmatprep.subr.bf16.mxu0 0
  %235 = vmatpush1.bf16.msra.mxu0 0
  %236 = vmatprep.subr.bf16.mxu0 0
  %237 = vmatpush1.bf16.msra.mxu0 0
  %238 = vmatprep.subr.bf16.mxu0 0
  %239 = vmatpush1.bf16.msra.mxu0 0
  %240 = vmatprep.mubr.bf16.mxu0 0
  %241 = vmatmul.mubr.bf16.gmra.mrb[0].mxu0 %v206
  %v242 = vpop.f32.mrb[0].mxu0
  %v243 = vadd.f32 0.0, %v242
  %v244 = vpop.f32.mrb[0].mxu0
  %v245 = vpop.f32.mrb[0].mxu0
  %v246 = vpop.f32.mrb[0].mxu0
  %247 = vdwg.mxu0
  %v248 = vadd.f32 %v154, %v243
  %v249 = vtanh.pop %v248
  %v250 = vmul.f32 %v39, %v249
  %v251 = vadd.f32 %v250, %v40
  %v252 = vmul.f32 %v251, 0.0
  %254 = vrot.lane.b32.xlu0 %v251, 64
  %v255 = vpop.permute.xlu0 %254
  %v257 = vmul.f32 %v251, %v255
  %259 = vrot.lane.b32.xlu0 %v257, 32
  %v260 = vpop.permute.xlu0 %259
  %v262 = vadd.f32 %v252, %v260
  %v263 = vtanh.pop %v262
  %265 = vrot.lane.b32.xlu0 %v263, 64
  %v266 = vpop.permute.xlu0 %265
  %v268 = vmul.f32 %v251, %v266
  %270 = vrot.lane.b32.xlu0 %v268, 32
  %v271 = vpop.permute.xlu0 %270
  %273 = vst.msk [vmem:[#allocation2] sm:$0xff] %vm204, %v271
  %v274 = vpack.c.bf16 %v268, %v268
  %276 = vrot.lane.b32.xlu0 %v274, 32
  %v277 = vpop.permute.xlu0 %276
  %v279 = vsel %vm204, %v277, 0
  %281 = vmatprep.subr.bf16.mxu0 0
  %282 = vmatpush1.bf16.msra.mxu0 %v200
  %283 = vmatprep.subr.bf16.mxu0 0
  %284 = vmatpush1.bf16.msra.mxu0 %v201
  %285 = vmatprep.subr.bf16.mxu0 0
  %286 = vmatpush1.bf16.msra.mxu0 0
  %287 = vmatprep.subr.bf16.mxu0 0
  %288 = vmatpush1.bf16.msra.mxu0 0
  %289 = vmatprep.subr.bf16.mxu0 0
  %290 = vmatpush1.bf16.msra.mxu0 0
  %291 = vmatprep.subr.bf16.mxu0 0
  %292 = vmatpush1.bf16.msra.mxu0 0
  %293 = vmatprep.subr.bf16.mxu0 0
  %294 = vmatpush1.bf16.msra.mxu0 0
  %295 = vmatprep.subr.bf16.mxu0 0
  %296 = vmatpush1.bf16.msra.mxu0 0
  %297 = vmatprep.subr.bf16.mxu0 0
  %298 = vmatpush1.bf16.msra.mxu0 0
  %299 = vmatprep.subr.bf16.mxu0 0
  %300 = vmatpush1.bf16.msra.mxu0 0
  %301 = vmatprep.subr.bf16.mxu0 0
  %302 = vmatpush1.bf16.msra.mxu0 0
  %303 = vmatprep.subr.bf16.mxu0 0
  %304 = vmatpush1.bf16.msra.mxu0 0
  %305 = vmatprep.subr.bf16.mxu0 0
  %306 = vmatpush1.bf16.msra.mxu0 0
  %307 = vmatprep.subr.bf16.mxu0 0
  %308 = vmatpush1.bf16.msra.mxu0 0
  %309 = vmatprep.subr.bf16.mxu0 0
  %310 = vmatpush1.bf16.msra.mxu0 0
  %311 = vmatprep.subr.bf16.mxu0 0
  %312 = vmatpush1.bf16.msra.mxu0 0
  %313 = vmatprep.mubr.bf16.mxu0 0
  %314 = vmatmul.mubr.bf16.gmra.mrb[0].mxu0 %v279
  %v315 = vpop.f32.mrb[0].mxu0
  %v316 = vadd.f32 0.0, %v315
  %v317 = vpop.f32.mrb[0].mxu0
  %v318 = vpop.f32.mrb[0].mxu0
  %v319 = vpop.f32.mrb[0].mxu0
  %320 = vdwg.mxu0
  %v321 = vadd.f32 %v159, %v316
  %v322 = vtanh.pop %v321
  %v323 = vmul.f32 %v39, %v322
  %v324 = vadd.f32 %v323, %v40
  %v325 = vmul.f32 %v324, %v262
  %327 = vrot.lane.b32.xlu0 %v324, 64
  %v328 = vpop.permute.xlu0 %327
  %v330 = vmul.f32 %v324, %v328
  %332 = vrot.lane.b32.xlu0 %v330, 32
  %v333 = vpop.permute.xlu0 %332
  %v335 = vadd.f32 %v325, %v333
  %v336 = vtanh.pop %v335
  %338 = vrot.lane.b32.xlu0 %v336, 64
  %v339 = vpop.permute.xlu0 %338
  %v341 = vmul.f32 %v324, %v339
  %343 = vrot.lane.b32.xlu0 %v341, 32
  %v344 = vpop.permute.xlu0 %343
  %346 = vst.msk [vmem:[#allocation2 + $0x8] sm:$0xff] %vm204, %v344
  %v347 = vpack.c.bf16 %v341, %v341
  %349 = vrot.lane.b32.xlu0 %v347, 32
  %v350 = vpop.permute.xlu0 %349
  %v352 = vsel %vm204, %v350, 0
  %354 = vmatprep.subr.bf16.mxu0 0
  %355 = vmatpush1.bf16.msra.mxu0 %v200
  %356 = vmatprep.subr.bf16.mxu0 0
  %357 = vmatpush1.bf16.msra.mxu0 %v201
  %358 = vmatprep.subr.bf16.mxu0 0
  %359 = vmatpush1.bf16.msra.mxu0 0
  %360 = vmatprep.subr.bf16.mxu0 0
  %361 = vmatpush1.bf16.msra.mxu0 0
  %362 = vmatprep.subr.bf16.mxu0 0
  %363 = vmatpush1.bf16.msra.mxu0 0
  %364 = vmatprep.subr.bf16.mxu0 0
  %365 = vmatpush1.bf16.msra.mxu0 0
  %366 = vmatprep.subr.bf16.mxu0 0
  %367 = vmatpush1.bf16.msra.mxu0 0
  %368 = vmatprep.subr.bf16.mxu0 0
  %369 = vmatpush1.bf16.msra.mxu0 0
  %370 = vmatprep.subr.bf16.mxu0 0
  %371 = vmatpush1.bf16.msra.mxu0 0
  %372 = vmatprep.subr.bf16.mxu0 0
  %373 = vmatpush1.bf16.msra.mxu0 0
  %374 = vmatprep.subr.bf16.mxu0 0
  %375 = vmatpush1.bf16.msra.mxu0 0
  %376 = vmatprep.subr.bf16.mxu0 0
  %377 = vmatpush1.bf16.msra.mxu0 0
  %378 = vmatprep.subr.bf16.mxu0 0
  %379 = vmatpush1.bf16.msra.mxu0 0
  %380 = vmatprep.subr.bf16.mxu0 0
  %381 = vmatpush1.bf16.msra.mxu0 0
  %382 = vmatprep.subr.bf16.mxu0 0
  %383 = vmatpush1.bf16.msra.mxu0 0
  %384 = vmatprep.subr.bf16.mxu0 0
  %385 = vmatpush1.bf16.msra.mxu0 0
  %386 = vmatprep.mubr.bf16.mxu0 0
  %387 = vmatmul.mubr.bf16.gmra.mrb[0].mxu0 %v352
  %v388 = vpop.f32.mrb[0].mxu0
  %v389 = vadd.f32 0.0, %v388
  %v390 = vpop.f32.mrb[0].mxu0
  %v391 = vpop.f32.mrb[0].mxu0
  %v392 = vpop.f32.mrb[0].mxu0
  %393 = vdwg.mxu0
  %v394 = vadd.f32 %v164, %v389
  %v395 = vtanh.pop %v394
  %v396 = vmul.f32 %v39, %v395
  %v397 = vadd.f32 %v396, %v40
  %v398 = vmul.f32 %v397, %v335
  %400 = vrot.lane.b32.xlu0 %v397, 64
  %v401 = vpop.permute.xlu0 %400
  %v403 = vmul.f32 %v397, %v401
  %405 = vrot.lane.b32.xlu0 %v403, 32
  %v406 = vpop.permute.xlu0 %405
  %v408 = vadd.f32 %v398, %v406
  %v409 = vtanh.pop %v408
  %411 = vrot.lane.b32.xlu0 %v409, 64
  %v412 = vpop.permute.xlu0 %411
  %v414 = vmul.f32 %v397, %v412
  %416 = vrot.lane.b32.xlu0 %v414, 32
  %v417 = vpop.permute.xlu0 %416
  %419 = vst.msk [vmem:[#allocation2 + $0x10] sm:$0xff] %vm204, %v417
  %v420 = vpack.c.bf16 %v414, %v414
  %422 = vrot.lane.b32.xlu0 %v420, 32
  %v423 = vpop.permute.xlu0 %422
  %v425 = vsel %vm204, %v423, 0
  %427 = vmatprep.subr.bf16.mxu0 0
  %428 = vmatpush1.bf16.msra.mxu0 %v200
  %429 = vmatprep.subr.bf16.mxu0 0
  %430 = vmatpush1.bf16.msra.mxu0 %v201
  %431 = vmatprep.subr.bf16.mxu0 0
  %432 = vmatpush1.bf16.msra.mxu0 0
  %433 = vmatprep.subr.bf16.mxu0 0
  %434 = vmatpush1.bf16.msra.mxu0 0
  %435 = vmatprep.subr.bf16.mxu0 0
  %436 = vmatpush1.bf16.msra.mxu0 0
  %437 = vmatprep.subr.bf16.mxu0 0
  %438 = vmatpush1.bf16.msra.mxu0 0
  %439 = vmatprep.subr.bf16.mxu0 0
  %440 = vmatpush1.bf16.msra.mxu0 0
  %441 = vmatprep.subr.bf16.mxu0 0
  %442 = vmatpush1.bf16.msra.mxu0 0
  %443 = vmatprep.subr.bf16.mxu0 0
  %444 = vmatpush1.bf16.msra.mxu0 0
  %445 = vmatprep.subr.bf16.mxu0 0
  %446 = vmatpush1.bf16.msra.mxu0 0
  %447 = vmatprep.subr.bf16.mxu0 0
  %448 = vmatpush1.bf16.msra.mxu0 0
  %449 = vmatprep.subr.bf16.mxu0 0
  %450 = vmatpush1.bf16.msra.mxu0 0
  %451 = vmatprep.subr.bf16.mxu0 0
  %452 = vmatpush1.bf16.msra.mxu0 0
  %453 = vmatprep.subr.bf16.mxu0 0
  %454 = vmatpush1.bf16.msra.mxu0 0
  %455 = vmatprep.subr.bf16.mxu0 0
  %456 = vmatpush1.bf16.msra.mxu0 0
  %457 = vmatprep.subr.bf16.mxu0 0
  %458 = vmatpush1.bf16.msra.mxu0 0
  %459 = vmatprep.mubr.bf16.mxu0 0
  %460 = vmatmul.mubr.bf16.gmra.mrb[0].mxu0 %v425
  %v461 = vpop.f32.mrb[0].mxu0
  %v462 = vadd.f32 0.0, %v461
  %v463 = vpop.f32.mrb[0].mxu0
  %v464 = vpop.f32.mrb[0].mxu0
  %v465 = vpop.f32.mrb[0].mxu0
  %466 = vdwg.mxu0
  %v467 = vadd.f32 %v169, %v462
  %v468 = vtanh.pop %v467
  %v469 = vmul.f32 %v39, %v468
  %v470 = vadd.f32 %v469, %v40
  %v471 = vmul.f32 %v470, %v408
  %473 = vrot.lane.b32.xlu0 %v470, 64
  %v474 = vpop.permute.xlu0 %473
  %v476 = vmul.f32 %v470, %v474
  %478 = vrot.lane.b32.xlu0 %v476, 32
  %v479 = vpop.permute.xlu0 %478
  %v481 = vadd.f32 %v471, %v479
  %v482 = vtanh.pop %v481
  %484 = vrot.lane.b32.xlu0 %v482, 64
  %v485 = vpop.permute.xlu0 %484
  %v487 = vmul.f32 %v470, %v485
  %489 = vrot.lane.b32.xlu0 %v487, 32
  %v490 = vpop.permute.xlu0 %489
  %492 = vst.msk [vmem:[#allocation2 + $0x18] sm:$0xff] %vm204, %v490
  %v493 = vpack.c.bf16 %v487, %v487
  %495 = vrot.lane.b32.xlu0 %v493, 32
  %v496 = vpop.permute.xlu0 %495
  %v498 = vsel %vm204, %v496, 0
  %500 = vmatprep.subr.bf16.mxu0 0
  %501 = vmatpush1.bf16.msra.mxu0 %v200
  %502 = vmatprep.subr.bf16.mxu0 0
  %503 = vmatpush1.bf16.msra.mxu0 %v201
  %504 = vmatprep.subr.bf16.mxu0 0
  %505 = vmatpush1.bf16.msra.mxu0 0
  %506 = vmatprep.subr.bf16.mxu0 0
  %507 = vmatpush1.bf16.msra.mxu0 0
  %508 = vmatprep.subr.bf16.mxu0 0
  %509 = vmatpush1.bf16.msra.mxu0 0
  %510 = vmatprep.subr.bf16.mxu0 0
  %511 = vmatpush1.bf16.msra.mxu0 0
  %512 = vmatprep.subr.bf16.mxu0 0
  %513 = vmatpush1.bf16.msra.mxu0 0
  %514 = vmatprep.subr.bf16.mxu0 0
  %515 = vmatpush1.bf16.msra.mxu0 0
  %516 = vmatprep.subr.bf16.mxu0 0
  %517 = vmatpush1.bf16.msra.mxu0 0
  %518 = vmatprep.subr.bf16.mxu0 0
  %519 = vmatpush1.bf16.msra.mxu0 0
  %520 = vmatprep.subr.bf16.mxu0 0
  %521 = vmatpush1.bf16.msra.mxu0 0
  %522 = vmatprep.subr.bf16.mxu0 0
  %523 = vmatpush1.bf16.msra.mxu0 0
  %524 = vmatprep.subr.bf16.mxu0 0
  %525 = vmatpush1.bf16.msra.mxu0 0
  %526 = vmatprep.subr.bf16.mxu0 0
  %527 = vmatpush1.bf16.msra.mxu0 0
  %528 = vmatprep.subr.bf16.mxu0 0
  %529 = vmatpush1.bf16.msra.mxu0 0
  %530 = vmatprep.subr.bf16.mxu0 0
  %531 = vmatpush1.bf16.msra.mxu0 0
  %532 = vmatprep.mubr.bf16.mxu0 0
  %533 = vmatmul.mubr.bf16.gmra.mrb[0].mxu0 %v498
  %v534 = vpop.f32.mrb[0].mxu0
  %v535 = vadd.f32 0.0, %v534
  %v536 = vpop.f32.mrb[0].mxu0
  %v537 = vpop.f32.mrb[0].mxu0
  %v538 = vpop.f32.mrb[0].mxu0
  %539 = vdwg.mxu0
  %v540 = vadd.f32 %v174, %v535
  %v541 = vtanh.pop %v540
  %v542 = vmul.f32 %v39, %v541
  %v543 = vadd.f32 %v542, %v40
  %v544 = vmul.f32 %v543, %v481
  %546 = vrot.lane.b32.xlu0 %v543, 64
  %v547 = vpop.permute.xlu0 %546
  %v549 = vmul.f32 %v543, %v547
  %551 = vrot.lane.b32.xlu0 %v549, 32
  %v552 = vpop.permute.xlu0 %551
  %v554 = vadd.f32 %v544, %v552
  %v555 = vtanh.pop %v554
  %557 = vrot.lane.b32.xlu0 %v555, 64
  %v558 = vpop.permute.xlu0 %557
  %v560 = vmul.f32 %v543, %v558
  %562 = vrot.lane.b32.xlu0 %v560, 32
  %v563 = vpop.permute.xlu0 %562
  %565 = vst.msk [vmem:[#allocation2 + $0x20] sm:$0xff] %vm204, %v563
  %v566 = vpack.c.bf16 %v560, %v560
  %568 = vrot.lane.b32.xlu0 %v566, 32
  %v569 = vpop.permute.xlu0 %568
  %v571 = vsel %vm204, %v569, 0
  %573 = vmatprep.subr.bf16.mxu0 0
  %574 = vmatpush1.bf16.msra.mxu0 %v200
  %575 = vmatprep.subr.bf16.mxu0 0
  %576 = vmatpush1.bf16.msra.mxu0 %v201
  %577 = vmatprep.subr.bf16.mxu0 0
  %578 = vmatpush1.bf16.msra.mxu0 0
  %579 = vmatprep.subr.bf16.mxu0 0
  %580 = vmatpush1.bf16.msra.mxu0 0
  %581 = vmatprep.subr.bf16.mxu0 0
  %582 = vmatpush1.bf16.msra.mxu0 0
  %583 = vmatprep.subr.bf16.mxu0 0
  %584 = vmatpush1.bf16.msra.mxu0 0
  %585 = vmatprep.subr.bf16.mxu0 0
  %586 = vmatpush1.bf16.msra.mxu0 0
  %587 = vmatprep.subr.bf16.mxu0 0
  %588 = vmatpush1.bf16.msra.mxu0 0
  %589 = vmatprep.subr.bf16.mxu0 0
  %590 = vmatpush1.bf16.msra.mxu0 0
  %591 = vmatprep.subr.bf16.mxu0 0
  %592 = vmatpush1.bf16.msra.mxu0 0
  %593 = vmatprep.subr.bf16.mxu0 0
  %594 = vmatpush1.bf16.msra.mxu0 0
  %595 = vmatprep.subr.bf16.mxu0 0
  %596 = vmatpush1.bf16.msra.mxu0 0
  %597 = vmatprep.subr.bf16.mxu0 0
  %598 = vmatpush1.bf16.msra.mxu0 0
  %599 = vmatprep.subr.bf16.mxu0 0
  %600 = vmatpush1.bf16.msra.mxu0 0
  %601 = vmatprep.subr.bf16.mxu0 0
  %602 = vmatpush1.bf16.msra.mxu0 0
  %603 = vmatprep.subr.bf16.mxu0 0
  %604 = vmatpush1.bf16.msra.mxu0 0
  %605 = vmatprep.mubr.bf16.mxu0 0
  %606 = vmatmul.mubr.bf16.gmra.mrb[0].mxu0 %v571
  %v607 = vpop.f32.mrb[0].mxu0
  %v608 = vadd.f32 0.0, %v607
  %v609 = vpop.f32.mrb[0].mxu0
  %v610 = vpop.f32.mrb[0].mxu0
  %v611 = vpop.f32.mrb[0].mxu0
  %612 = vdwg.mxu0
  %v613 = vadd.f32 %v179, %v608
  %v614 = vtanh.pop %v613
  %v615 = vmul.f32 %v39, %v614
  %v616 = vadd.f32 %v615, %v40
  %v617 = vmul.f32 %v616, %v554
  %619 = vrot.lane.b32.xlu0 %v616, 64
  %v620 = vpop.permute.xlu0 %619
  %v622 = vmul.f32 %v616, %v620
  %624 = vrot.lane.b32.xlu0 %v622, 32
  %v625 = vpop.permute.xlu0 %624
  %v627 = vadd.f32 %v617, %v625
  %v628 = vtanh.pop %v627
  %630 = vrot.lane.b32.xlu0 %v628, 64
  %v631 = vpop.permute.xlu0 %630
  %v633 = vmul.f32 %v616, %v631
  %635 = vrot.lane.b32.xlu0 %v633, 32
  %v636 = vpop.permute.xlu0 %635
  %638 = vst.msk [vmem:[#allocation2 + $0x28] sm:$0xff] %vm204, %v636
  %v639 = vpack.c.bf16 %v633, %v633
  %641 = vrot.lane.b32.xlu0 %v639, 32
  %v642 = vpop.permute.xlu0 %641
  %v644 = vsel %vm204, %v642, 0
  %646 = vmatprep.subr.bf16.mxu0 0
  %647 = vmatpush1.bf16.msra.mxu0 %v200
  %648 = vmatprep.subr.bf16.mxu0 0
  %649 = vmatpush1.bf16.msra.mxu0 %v201
  %650 = vmatprep.subr.bf16.mxu0 0
  %651 = vmatpush1.bf16.msra.mxu0 0
  %652 = vmatprep.subr.bf16.mxu0 0
  %653 = vmatpush1.bf16.msra.mxu0 0
  %654 = vmatprep.subr.bf16.mxu0 0
  %655 = vmatpush1.bf16.msra.mxu0 0
  %656 = vmatprep.subr.bf16.mxu0 0
  %657 = vmatpush1.bf16.msra.mxu0 0
  %658 = vmatprep.subr.bf16.mxu0 0
  %659 = vmatpush1.bf16.msra.mxu0 0
  %660 = vmatprep.subr.bf16.mxu0 0
  %661 = vmatpush1.bf16.msra.mxu0 0
  %662 = vmatprep.subr.bf16.mxu0 0
  %663 = vmatpush1.bf16.msra.mxu0 0
  %664 = vmatprep.subr.bf16.mxu0 0
  %665 = vmatpush1.bf16.msra.mxu0 0
  %666 = vmatprep.subr.bf16.mxu0 0
  %667 = vmatpush1.bf16.msra.mxu0 0
  %668 = vmatprep.subr.bf16.mxu0 0
  %669 = vmatpush1.bf16.msra.mxu0 0
  %670 = vmatprep.subr.bf16.mxu0 0
  %671 = vmatpush1.bf16.msra.mxu0 0
  %672 = vmatprep.subr.bf16.mxu0 0
  %673 = vmatpush1.bf16.msra.mxu0 0
  %674 = vmatprep.subr.bf16.mxu0 0
  %675 = vmatpush1.bf16.msra.mxu0 0
  %676 = vmatprep.subr.bf16.mxu0 0
  %677 = vmatpush1.bf16.msra.mxu0 0
  %678 = vmatprep.mubr.bf16.mxu0 0
  %679 = vmatmul.mubr.bf16.gmra.mrb[0].mxu0 %v644
  %v680 = vpop.f32.mrb[0].mxu0
  %v681 = vadd.f32 0.0, %v680
  %v682 = vpop.f32.mrb[0].mxu0
  %v683 = vpop.f32.mrb[0].mxu0
  %v684 = vpop.f32.mrb[0].mxu0
  %685 = vdwg.mxu0
  %v686 = vadd.f32 %v184, %v681
  %v687 = vtanh.pop %v686
  %v688 = vmul.f32 %v39, %v687
  %v689 = vadd.f32 %v688, %v40
  %v690 = vmul.f32 %v689, %v627
  %692 = vrot.lane.b32.xlu0 %v689, 64
  %v693 = vpop.permute.xlu0 %692
  %v695 = vmul.f32 %v689, %v693
  %697 = vrot.lane.b32.xlu0 %v695, 32
  %v698 = vpop.permute.xlu0 %697
  %v700 = vadd.f32 %v690, %v698
  %v701 = vtanh.pop %v700
  %703 = vrot.lane.b32.xlu0 %v701, 64
  %v704 = vpop.permute.xlu0 %703
  %v706 = vmul.f32 %v689, %v704
  %708 = vrot.lane.b32.xlu0 %v706, 32
  %v709 = vpop.permute.xlu0 %708
  %711 = vst.msk [vmem:[#allocation2 + $0x30] sm:$0xff] %vm204, %v709
  %v712 = vpack.c.bf16 %v706, %v706
  %714 = vrot.lane.b32.xlu0 %v712, 32
  %v715 = vpop.permute.xlu0 %714
  %v717 = vsel %vm204, %v715, 0
  %719 = vmatprep.subr.bf16.mxu0 0
  %720 = vmatpush1.bf16.msra.mxu0 %v200
  %721 = vmatprep.subr.bf16.mxu0 0
  %722 = vmatpush1.bf16.msra.mxu0 %v201
  %723 = vmatprep.subr.bf16.mxu0 0
  %724 = vmatpush1.bf16.msra.mxu0 0
  %725 = vmatprep.subr.bf16.mxu0 0
  %726 = vmatpush1.bf16.msra.mxu0 0
  %727 = vmatprep.subr.bf16.mxu0 0
  %728 = vmatpush1.bf16.msra.mxu0 0
  %729 = vmatprep.subr.bf16.mxu0 0
  %730 = vmatpush1.bf16.msra.mxu0 0
  %731 = vmatprep.subr.bf16.mxu0 0
  %732 = vmatpush1.bf16.msra.mxu0 0
  %733 = vmatprep.subr.bf16.mxu0 0
  %734 = vmatpush1.bf16.msra.mxu0 0
  %735 = vmatprep.subr.bf16.mxu0 0
  %736 = vmatpush1.bf16.msra.mxu0 0
  %737 = vmatprep.subr.bf16.mxu0 0
  %738 = vmatpush1.bf16.msra.mxu0 0
  %739 = vmatprep.subr.bf16.mxu0 0
  %740 = vmatpush1.bf16.msra.mxu0 0
  %741 = vmatprep.subr.bf16.mxu0 0
  %742 = vmatpush1.bf16.msra.mxu0 0
  %743 = vmatprep.subr.bf16.mxu0 0
  %744 = vmatpush1.bf16.msra.mxu0 0
  %745 = vmatprep.subr.bf16.mxu0 0
  %746 = vmatpush1.bf16.msra.mxu0 0
  %747 = vmatprep.subr.bf16.mxu0 0
  %748 = vmatpush1.bf16.msra.mxu0 0
  %749 = vmatprep.subr.bf16.mxu0 0
  %750 = vmatpush1.bf16.msra.mxu0 0
  %751 = vmatprep.mubr.bf16.mxu0 0
  %752 = vmatmul.mubr.bf16.gmra.mrb[0].mxu0 %v717
  %v753 = vpop.f32.mrb[0].mxu0
  %v754 = vadd.f32 0.0, %v753
  %v755 = vpop.f32.mrb[0].mxu0
  %v756 = vpop.f32.mrb[0].mxu0
  %v757 = vpop.f32.mrb[0].mxu0
  %758 = vdwg.mxu0
  %v759 = vadd.f32 %v189, %v754
  %v760 = vtanh.pop %v759
  %v761 = vmul.f32 %v39, %v760
  %v762 = vadd.f32 %v761, %v40
  %v763 = vmul.f32 %v762, %v700
  %765 = vrot.lane.b32.xlu0 %v762, 64
  %v766 = vpop.permute.xlu0 %765
  %v768 = vmul.f32 %v762, %v766
  %770 = vrot.lane.b32.xlu0 %v768, 32
  %v771 = vpop.permute.xlu0 %770
  %v773 = vadd.f32 %v763, %v771
  %v774 = vtanh.pop %v773
  %776 = vrot.lane.b32.xlu0 %v774, 64
  %v777 = vpop.permute.xlu0 %776
  %v779 = vmul.f32 %v762, %v777
  %781 = vrot.lane.b32.xlu0 %v779, 32
  %v782 = vpop.permute.xlu0 %781
  %784 = vst.msk [vmem:[#allocation2 + $0x38] sm:$0xff] %vm204, %v782
  %v785 = vld [vmem:[#allocation2] sm:$0xff]
  %v786 = vld [vmem:[#allocation2 + $0x8] sm:$0xff]
  %v787 = vld [vmem:[#allocation2 + $0x10] sm:$0xff]
  %v788 = vld [vmem:[#allocation2 + $0x18] sm:$0xff]
  %v789 = vld [vmem:[#allocation2 + $0x20] sm:$0xff]
  %v790 = vld [vmem:[#allocation2 + $0x28] sm:$0xff]
  %v791 = vld [vmem:[#allocation2 + $0x30] sm:$0xff]
  %v792 = vld [vmem:[#allocation2 + $0x38] sm:$0xff]
  %v793 = vld [vmem:[%s4] sm:$0xff]
  %v794 = vld [vmem:[%s4 + $0x8] sm:$0xff]
  %v795 = vld [vmem:[%s4 + $0x10] sm:$0xff]
  %v796 = vld [vmem:[%s4 + $0x18] sm:$0xff]
  %v797 = vld [vmem:[%s5] sm:$0xf]
  %v798 = vld [vmem:[%s5 + $0x4] sm:$0xf]
  %v799 = vld [vmem:[%s5 + $0x8] sm:$0xf]
  %v800 = vld [vmem:[%s5 + $0xc] sm:$0xf]
  %v801 = vld [vmem:[%s6] sm:$0x1]
  %v803 = vlaneseq
  %v804 = vshrl.u32 %v803, 7
  %v805 = vsub.s32 0, %v804
  %v806 = vrot.slane %v801, %v805
  %v809 = vsel %vm204, %v785, 0
  %v812 = vsel %vm204, %v786, 0
  %v815 = vsel %vm204, %v787, 0
  %v818 = vsel %vm204, %v788, 0
  %v821 = vsel %vm204, %v789, 0
  %v824 = vsel %vm204, %v790, 0
  %v827 = vsel %vm204, %v791, 0
  %v830 = vsel %vm204, %v792, 0
  %832 = vmatprep.subr.mxu0 0.0
  %833 = vmatpush1.msra.mxu0 %v793
  %834 = vmatprep.subr.mxu0 0.0
  %835 = vmatpush1.msra.mxu0 %v794
  %836 = vmatprep.subr.mxu0 0.0
  %837 = vmatpush1.msra.mxu0 %v795
  %838 = vmatprep.subr.mxu0 0.0
  %839 = vmatpush1.msra.mxu0 %v796
  %840 = vmatprep.subr.mxu0 0.0
  %841 = vmatpush1.msra.mxu0 0.0
  %842 = vmatprep.subr.mxu0 0.0
  %843 = vmatpush1.msra.mxu0 0.0
  %844 = vmatprep.subr.mxu0 0.0
  %845 = vmatpush1.msra.mxu0 0.0
  %846 = vmatprep.subr.mxu0 0.0
  %847 = vmatpush1.msra.mxu0 0.0
  %848 = vmatprep.subr.mxu0 0.0
  %849 = vmatpush1.msra.mxu0 0.0
  %850 = vmatprep.subr.mxu0 0.0
  %851 = vmatpush1.msra.mxu0 0.0
  %852 = vmatprep.subr.mxu0 0.0
  %853 = vmatpush1.msra.mxu0 0.0
  %854 = vmatprep.subr.mxu0 0.0
  %855 = vmatpush1.msra.mxu0 0.0
  %856 = vmatprep.subr.mxu0 0.0
  %857 = vmatpush1.msra.mxu0 0.0
  %858 = vmatprep.subr.mxu0 0.0
  %859 = vmatpush1.msra.mxu0 0.0
  %860 = vmatprep.subr.mxu0 0.0
  %861 = vmatpush1.msra.mxu0 0.0
  %862 = vmatprep.subr.mxu0 0.0
  %863 = vmatpush1.msra.mxu0 0.0
  %864 = vmatprep.subr.mxu0 0.0
  %865 = vmatpush1.msra.mxu0 0.0
  %866 = vmatprep.subr.mxu0 0.0
  %867 = vmatpush1.msra.mxu0 0.0
  %868 = vmatprep.subr.mxu0 0.0
  %869 = vmatpush1.msra.mxu0 0.0
  %870 = vmatprep.subr.mxu0 0.0
  %871 = vmatpush1.msra.mxu0 0.0
  %872 = vmatprep.subr.mxu0 0.0
  %873 = vmatpush1.msra.mxu0 0.0
  %874 = vmatprep.subr.mxu0 0.0
  %875 = vmatpush1.msra.mxu0 0.0
  %876 = vmatprep.subr.mxu0 0.0
  %877 = vmatpush1.msra.mxu0 0.0
  %878 = vmatprep.subr.mxu0 0.0
  %879 = vmatpush1.msra.mxu0 0.0
  %880 = vmatprep.subr.mxu0 0.0
  %881 = vmatpush1.msra.mxu0 0.0
  %882 = vmatprep.subr.mxu0 0.0
  %883 = vmatpush1.msra.mxu0 0.0
  %884 = vmatprep.subr.mxu0 0.0
  %885 = vmatpush1.msra.mxu0 0.0
  %886 = vmatprep.subr.mxu0 0.0
  %887 = vmatpush1.msra.mxu0 0.0
  %888 = vmatprep.subr.mxu0 0.0
  %889 = vmatpush1.msra.mxu0 0.0
  %890 = vmatprep.subr.mxu0 0.0
  %891 = vmatpush1.msra.mxu0 0.0
  %892 = vmatprep.subr.mxu0 0.0
  %893 = vmatpush1.msra.mxu0 0.0
  %894 = vmatprep.subr.mxu0 0.0
  %895 = vmatpush1.msra.mxu0 0.0
  %896 = vmatprep.mubr.f32.mxu0 0.0
  %897 = vmatmul.mubr.f32.gmra.mrb[0].mxu0 %v809
  %v898 = vpop.f32.mrb[0].mxu0
  %v899 = vadd.f32 %v806, %v898
  %v900 = vpop.f32.mrb[0].mxu0
  %901 = vmatprep.mubr.f32.mxu0 0.0
  %902 = vmatmul.mubr.f32.gmra.mrb[0].mxu0 %v812
  %v903 = vpop.f32.mrb[0].mxu0
  %v904 = vadd.f32 %v806, %v903
  %v905 = vpop.f32.mrb[0].mxu0
  %906 = vmatprep.mubr.f32.mxu0 0.0
  %907 = vmatmul.mubr.f32.gmra.mrb[0].mxu0 %v815
  %v908 = vpop.f32.mrb[0].mxu0
  %v909 = vadd.f32 %v806, %v908
  %v910 = vpop.f32.mrb[0].mxu0
  %911 = vmatprep.mubr.f32.mxu0 0.0
  %912 = vmatmul.mubr.f32.gmra.mrb[0].mxu0 %v818
  %v913 = vpop.f32.mrb[0].mxu0
  %v914 = vadd.f32 %v806, %v913
  %v915 = vpop.f32.mrb[0].mxu0
  %916 = vmatprep.mubr.f32.mxu0 0.0
  %917 = vmatmul.mubr.f32.gmra.mrb[0].mxu0 %v821
  %v918 = vpop.f32.mrb[0].mxu0
  %v919 = vadd.f32 %v806, %v918
  %v920 = vpop.f32.mrb[0].mxu0
  %921 = vmatprep.mubr.f32.mxu0 0.0
  %922 = vmatmul.mubr.f32.gmra.mrb[0].mxu0 %v824
  %v923 = vpop.f32.mrb[0].mxu0
  %v924 = vadd.f32 %v806, %v923
  %v925 = vpop.f32.mrb[0].mxu0
  %926 = vmatprep.mubr.f32.mxu0 0.0
  %927 = vmatmul.mubr.f32.gmra.mrb[0].mxu0 %v827
  %v928 = vpop.f32.mrb[0].mxu0
  %v929 = vadd.f32 %v806, %v928
  %v930 = vpop.f32.mrb[0].mxu0
  %931 = vmatprep.mubr.f32.mxu0 0.0
  %932 = vmatmul.mubr.f32.gmra.mrb[0].mxu0 %v830
  %v933 = vpop.f32.mrb[0].mxu0
  %v934 = vadd.f32 %v806, %v933
  %v935 = vpop.f32.mrb[0].mxu0
  %936 = vdwg.mxu0
  %v941 = vunpack.c.l.b16 %v797
  %v942 = vunpack.c.l.b16 %v798
  %v943 = vunpack.c.l.b16 %v799
  %v944 = vunpack.c.l.b16 %v800
  %v945 = vpack.c.b16 %v942, %v941
  %v946 = vpack.c.b16 %v944, %v943
  %949 = vmatprep.subr.bf16.mxu0 0
  %950 = vmatpush1.bf16.msra.mxu0 %v945
  %951 = vmatprep.subr.bf16.mxu0 0
  %952 = vmatpush1.bf16.msra.mxu0 %v946
  %953 = vmatprep.subr.bf16.mxu0 0
  %954 = vmatpush1.bf16.msra.mxu0 0
  %955 = vmatprep.subr.bf16.mxu0 0
  %956 = vmatpush1.bf16.msra.mxu0 0
  %957 = vmatprep.subr.bf16.mxu0 0
  %958 = vmatpush1.bf16.msra.mxu0 0
  %959 = vmatprep.subr.bf16.mxu0 0
  %960 = vmatpush1.bf16.msra.mxu0 0
  %961 = vmatprep.subr.bf16.mxu0 0
  %962 = vmatpush1.bf16.msra.mxu0 0
  %963 = vmatprep.subr.bf16.mxu0 0
  %964 = vmatpush1.bf16.msra.mxu0 0
  %965 = vmatprep.subr.bf16.mxu0 0
  %966 = vmatpush1.bf16.msra.mxu0 0
  %967 = vmatprep.subr.bf16.mxu0 0
  %968 = vmatpush1.bf16.msra.mxu0 0
  %969 = vmatprep.subr.bf16.mxu0 0
  %970 = vmatpush1.bf16.msra.mxu0 0
  %971 = vmatprep.subr.bf16.mxu0 0
  %972 = vmatpush1.bf16.msra.mxu0 0
  %973 = vmatprep.subr.bf16.mxu0 0
  %974 = vmatpush1.bf16.msra.mxu0 0
  %975 = vmatprep.subr.bf16.mxu0 0
  %976 = vmatpush1.bf16.msra.mxu0 0
  %977 = vmatprep.subr.bf16.mxu0 0
  %978 = vmatpush1.bf16.msra.mxu0 0
  %979 = vmatprep.subr.bf16.mxu0 0
  %980 = vmatpush1.bf16.msra.mxu0 0
  %981 = vmatprep.mubr.bf16.mxu0 0
  %982 = vmatmul.mubr.bf16.gmra.mrb[0].mxu0 %v206
  %v983 = vpop.f32.mrb[0].mxu0
  %v984 = vadd.f32 0.0, %v983
  %v985 = vpop.f32.mrb[0].mxu0
  %v986 = vpop.f32.mrb[0].mxu0
  %v987 = vpop.f32.mrb[0].mxu0
  %988 = vdwg.mxu0
  %v989 = vadd.f32 %v899, %v984
  %v990 = vtanh.pop %v989
  %v991 = vmul.f32 %v39, %v990
  %v992 = vadd.f32 %v991, %v40
  %v993 = vmul.f32 %v992, 0.0
  %995 = vrot.lane.b32.xlu0 %v992, 64
  %v996 = vpop.permute.xlu0 %995
  %v998 = vmul.f32 %v992, %v996
  %1000 = vrot.lane.b32.xlu0 %v998, 32
  %v1001 = vpop.permute.xlu0 %1000
  %v1003 = vadd.f32 %v993, %v1001
  %v1004 = vtanh.pop %v1003
  %1006 = vrot.lane.b32.xlu0 %v1004, 64
  %v1007 = vpop.permute.xlu0 %1006
  %v1009 = vmul.f32 %v992, %v1007
  %v1010 = vpack.c.bf16 %v1009, %v1009
  %1012 = vrot.lane.b32.xlu0 %v1010, 32
  %v1013 = vpop.permute.xlu0 %1012
  %v1015 = vsel %vm204, %v1013, 0
  %1017 = vmatprep.subr.bf16.mxu0 0
  %1018 = vmatpush1.bf16.msra.mxu0 %v945
  %1019 = vmatprep.subr.bf16.mxu0 0
  %1020 = vmatpush1.bf16.msra.mxu0 %v946
  %1021 = vmatprep.subr.bf16.mxu0 0
  %1022 = vmatpush1.bf16.msra.mxu0 0
  %1023 = vmatprep.subr.bf16.mxu0 0
  %1024 = vmatpush1.bf16.msra.mxu0 0
  %1025 = vmatprep.subr.bf16.mxu0 0
  %1026 = vmatpush1.bf16.msra.mxu0 0
  %1027 = vmatprep.subr.bf16.mxu0 0
  %1028 = vmatpush1.bf16.msra.mxu0 0
  %1029 = vmatprep.subr.bf16.mxu0 0
  %1030 = vmatpush1.bf16.msra.mxu0 0
  %1031 = vmatprep.subr.bf16.mxu0 0
  %1032 = vmatpush1.bf16.msra.mxu0 0
  %1033 = vmatprep.subr.bf16.mxu0 0
  %1034 = vmatpush1.bf16.msra.mxu0 0
  %1035 = vmatprep.subr.bf16.mxu0 0
  %1036 = vmatpush1.bf16.msra.mxu0 0
  %1037 = vmatprep.subr.bf16.mxu0 0
  %1038 = vmatpush1.bf16.msra.mxu0 0
  %1039 = vmatprep.subr.bf16.mxu0 0
  %1040 = vmatpush1.bf16.msra.mxu0 0
  %1041 = vmatprep.subr.bf16.mxu0 0
  %1042 = vmatpush1.bf16.msra.mxu0 0
  %1043 = vmatprep.subr.bf16.mxu0 0
  %1044 = vmatpush1.bf16.msra.mxu0 0
  %1045 = vmatprep.subr.bf16.mxu0 0
  %1046 = vmatpush1.bf16.msra.mxu0 0
  %1047 = vmatprep.subr.bf16.mxu0 0
  %1048 = vmatpush1.bf16.msra.mxu0 0
  %1049 = vmatprep.mubr.bf16.mxu0 0
  %1050 = vmatmul.mubr.bf16.gmra.mrb[0].mxu0 %v1015
  %v1051 = vpop.f32.mrb[0].mxu0
  %v1052 = vadd.f32 0.0, %v1051
  %v1053 = vpop.f32.mrb[0].mxu0
  %v1054 = vpop.f32.mrb[0].mxu0
  %v1055 = vpop.f32.mrb[0].mxu0
  %1056 = vdwg.mxu0
  %v1057 = vadd.f32 %v904, %v1052
  %v1058 = vtanh.pop %v1057
  %v1059 = vmul.f32 %v39, %v1058
  %v1060 = vadd.f32 %v1059, %v40
  %v1061 = vmul.f32 %v1060, %v1003
  %1063 = vrot.lane.b32.xlu0 %v1060, 64
  %v1064 = vpop.permute.xlu0 %1063
  %v1066 = vmul.f32 %v1060, %v1064
  %1068 = vrot.lane.b32.xlu0 %v1066, 32
  %v1069 = vpop.permute.xlu0 %1068
  %v1071 = vadd.f32 %v1061, %v1069
  %v1072 = vtanh.pop %v1071
  %1074 = vrot.lane.b32.xlu0 %v1072, 64
  %v1075 = vpop.permute.xlu0 %1074
  %v1077 = vmul.f32 %v1060, %v1075
  %v1078 = vpack.c.bf16 %v1077, %v1077
  %1080 = vrot.lane.b32.xlu0 %v1078, 32
  %v1081 = vpop.permute.xlu0 %1080
  %v1083 = vsel %vm204, %v1081, 0
  %1085 = vmatprep.subr.bf16.mxu0 0
  %1086 = vmatpush1.bf16.msra.mxu0 %v945
  %1087 = vmatprep.subr.bf16.mxu0 0
  %1088 = vmatpush1.bf16.msra.mxu0 %v946
  %1089 = vmatprep.subr.bf16.mxu0 0
  %1090 = vmatpush1.bf16.msra.mxu0 0
  %1091 = vmatprep.subr.bf16.mxu0 0
  %1092 = vmatpush1.bf16.msra.mxu0 0
  %1093 = vmatprep.subr.bf16.mxu0 0
  %1094 = vmatpush1.bf16.msra.mxu0 0
  %1095 = vmatprep.subr.bf16.mxu0 0
  %1096 = vmatpush1.bf16.msra.mxu0 0
  %1097 = vmatprep.subr.bf16.mxu0 0
  %1098 = vmatpush1.bf16.msra.mxu0 0
  %1099 = vmatprep.subr.bf16.mxu0 0
  %1100 = vmatpush1.bf16.msra.mxu0 0
  %1101 = vmatprep.subr.bf16.mxu0 0
  %1102 = vmatpush1.bf16.msra.mxu0 0
  %1103 = vmatprep.subr.bf16.mxu0 0
  %1104 = vmatpush1.bf16.msra.mxu0 0
  %1105 = vmatprep.subr.bf16.mxu0 0
  %1106 = vmatpush1.bf16.msra.mxu0 0
  %1107 = vmatprep.subr.bf16.mxu0 0
  %1108 = vmatpush1.bf16.msra.mxu0 0
  %1109 = vmatprep.subr.bf16.mxu0 0
  %1110 = vmatpush1.bf16.msra.mxu0 0
  %1111 = vmatprep.subr.bf16.mxu0 0
  %1112 = vmatpush1.bf16.msra.mxu0 0
  %1113 = vmatprep.subr.bf16.mxu0 0
  %1114 = vmatpush1.bf16.msra.mxu0 0
  %1115 = vmatprep.subr.bf16.mxu0 0
  %1116 = vmatpush1.bf16.msra.mxu0 0
  %1117 = vmatprep.mubr.bf16.mxu0 0
  %1118 = vmatmul.mubr.bf16.gmra.mrb[0].mxu0 %v1083
  %v1119 = vpop.f32.mrb[0].mxu0
  %v1120 = vadd.f32 0.0, %v1119
  %v1121 = vpop.f32.mrb[0].mxu0
  %v1122 = vpop.f32.mrb[0].mxu0
  %v1123 = vpop.f32.mrb[0].mxu0
  %1124 = vdwg.mxu0
  %v1125 = vadd.f32 %v909, %v1120
  %v1126 = vtanh.pop %v1125
  %v1127 = vmul.f32 %v39, %v1126
  %v1128 = vadd.f32 %v1127, %v40
  %v1129 = vmul.f32 %v1128, %v1071
  %1131 = vrot.lane.b32.xlu0 %v1128, 64
  %v1132 = vpop.permute.xlu0 %1131
  %v1134 = vmul.f32 %v1128, %v1132
  %1136 = vrot.lane.b32.xlu0 %v1134, 32
  %v1137 = vpop.permute.xlu0 %1136
  %v1139 = vadd.f32 %v1129, %v1137
  %v1140 = vtanh.pop %v1139
  %1142 = vrot.lane.b32.xlu0 %v1140, 64
  %v1143 = vpop.permute.xlu0 %1142
  %v1145 = vmul.f32 %v1128, %v1143
  %v1146 = vpack.c.bf16 %v1145, %v1145
  %1148 = vrot.lane.b32.xlu0 %v1146, 32
  %v1149 = vpop.permute.xlu0 %1148
  %v1151 = vsel %vm204, %v1149, 0
  %1153 = vmatprep.subr.bf16.mxu0 0
  %1154 = vmatpush1.bf16.msra.mxu0 %v945
  %1155 = vmatprep.subr.bf16.mxu0 0
  %1156 = vmatpush1.bf16.msra.mxu0 %v946
  %1157 = vmatprep.subr.bf16.mxu0 0
  %1158 = vmatpush1.bf16.msra.mxu0 0
  %1159 = vmatprep.subr.bf16.mxu0 0
  %1160 = vmatpush1.bf16.msra.mxu0 0
  %1161 = vmatprep.subr.bf16.mxu0 0
  %1162 = vmatpush1.bf16.msra.mxu0 0
  %1163 = vmatprep.subr.bf16.mxu0 0
  %1164 = vmatpush1.bf16.msra.mxu0 0
  %1165 = vmatprep.subr.bf16.mxu0 0
  %1166 = vmatpush1.bf16.msra.mxu0 0
  %1167 = vmatprep.subr.bf16.mxu0 0
  %1168 = vmatpush1.bf16.msra.mxu0 0
  %1169 = vmatprep.subr.bf16.mxu0 0
  %1170 = vmatpush1.bf16.msra.mxu0 0
  %1171 = vmatprep.subr.bf16.mxu0 0
  %1172 = vmatpush1.bf16.msra.mxu0 0
  %1173 = vmatprep.subr.bf16.mxu0 0
  %1174 = vmatpush1.bf16.msra.mxu0 0
  %1175 = vmatprep.subr.bf16.mxu0 0
  %1176 = vmatpush1.bf16.msra.mxu0 0
  %1177 = vmatprep.subr.bf16.mxu0 0
  %1178 = vmatpush1.bf16.msra.mxu0 0
  %1179 = vmatprep.subr.bf16.mxu0 0
  %1180 = vmatpush1.bf16.msra.mxu0 0
  %1181 = vmatprep.subr.bf16.mxu0 0
  %1182 = vmatpush1.bf16.msra.mxu0 0
  %1183 = vmatprep.subr.bf16.mxu0 0
  %1184 = vmatpush1.bf16.msra.mxu0 0
  %1185 = vmatprep.mubr.bf16.mxu0 0
  %1186 = vmatmul.mubr.bf16.gmra.mrb[0].mxu0 %v1151
  %v1187 = vpop.f32.mrb[0].mxu0
  %v1188 = vadd.f32 0.0, %v1187
  %v1189 = vpop.f32.mrb[0].mxu0
  %v1190 = vpop.f32.mrb[0].mxu0
  %v1191 = vpop.f32.mrb[0].mxu0
  %1192 = vdwg.mxu0
  %v1193 = vadd.f32 %v914, %v1188
  %v1194 = vtanh.pop %v1193
  %v1195 = vmul.f32 %v39, %v1194
  %v1196 = vadd.f32 %v1195, %v40
  %v1197 = vmul.f32 %v1196, %v1139
  %1199 = vrot.lane.b32.xlu0 %v1196, 64
  %v1200 = vpop.permute.xlu0 %1199
  %v1202 = vmul.f32 %v1196, %v1200
  %1204 = vrot.lane.b32.xlu0 %v1202, 32
  %v1205 = vpop.permute.xlu0 %1204
  %v1207 = vadd.f32 %v1197, %v1205
  %v1208 = vtanh.pop %v1207
  %1210 = vrot.lane.b32.xlu0 %v1208, 64
  %v1211 = vpop.permute.xlu0 %1210
  %v1213 = vmul.f32 %v1196, %v1211
  %v1214 = vpack.c.bf16 %v1213, %v1213
  %1216 = vrot.lane.b32.xlu0 %v1214, 32
  %v1217 = vpop.permute.xlu0 %1216
  %v1219 = vsel %vm204, %v1217, 0
  %1221 = vmatprep.subr.bf16.mxu0 0
  %1222 = vmatpush1.bf16.msra.mxu0 %v945
  %1223 = vmatprep.subr.bf16.mxu0 0
  %1224 = vmatpush1.bf16.msra.mxu0 %v946
  %1225 = vmatprep.subr.bf16.mxu0 0
  %1226 = vmatpush1.bf16.msra.mxu0 0
  %1227 = vmatprep.subr.bf16.mxu0 0
  %1228 = vmatpush1.bf16.msra.mxu0 0
  %1229 = vmatprep.subr.bf16.mxu0 0
  %1230 = vmatpush1.bf16.msra.mxu0 0
  %1231 = vmatprep.subr.bf16.mxu0 0
  %1232 = vmatpush1.bf16.msra.mxu0 0
  %1233 = vmatprep.subr.bf16.mxu0 0
  %1234 = vmatpush1.bf16.msra.mxu0 0
  %1235 = vmatprep.subr.bf16.mxu0 0
  %1236 = vmatpush1.bf16.msra.mxu0 0
  %1237 = vmatprep.subr.bf16.mxu0 0
  %1238 = vmatpush1.bf16.msra.mxu0 0
  %1239 = vmatprep.subr.bf16.mxu0 0
  %1240 = vmatpush1.bf16.msra.mxu0 0
  %1241 = vmatprep.subr.bf16.mxu0 0
  %1242 = vmatpush1.bf16.msra.mxu0 0
  %1243 = vmatprep.subr.bf16.mxu0 0
  %1244 = vmatpush1.bf16.msra.mxu0 0
  %1245 = vmatprep.subr.bf16.mxu0 0
  %1246 = vmatpush1.bf16.msra.mxu0 0
  %1247 = vmatprep.subr.bf16.mxu0 0
  %1248 = vmatpush1.bf16.msra.mxu0 0
  %1249 = vmatprep.subr.bf16.mxu0 0
  %1250 = vmatpush1.bf16.msra.mxu0 0
  %1251 = vmatprep.subr.bf16.mxu0 0
  %1252 = vmatpush1.bf16.msra.mxu0 0
  %1253 = vmatprep.mubr.bf16.mxu0 0
  %1254 = vmatmul.mubr.bf16.gmra.mrb[0].mxu0 %v1219
  %v1255 = vpop.f32.mrb[0].mxu0
  %v1256 = vadd.f32 0.0, %v1255
  %v1257 = vpop.f32.mrb[0].mxu0
  %v1258 = vpop.f32.mrb[0].mxu0
  %v1259 = vpop.f32.mrb[0].mxu0
  %1260 = vdwg.mxu0
  %v1261 = vadd.f32 %v919, %v1256
  %v1262 = vtanh.pop %v1261
  %v1263 = vmul.f32 %v39, %v1262
  %v1264 = vadd.f32 %v1263, %v40
  %v1265 = vmul.f32 %v1264, %v1207
  %1267 = vrot.lane.b32.xlu0 %v1264, 64
  %v1268 = vpop.permute.xlu0 %1267
  %v1270 = vmul.f32 %v1264, %v1268
  %1272 = vrot.lane.b32.xlu0 %v1270, 32
  %v1273 = vpop.permute.xlu0 %1272
  %v1275 = vadd.f32 %v1265, %v1273
  %v1276 = vtanh.pop %v1275
  %1278 = vrot.lane.b32.xlu0 %v1276, 64
  %v1279 = vpop.permute.xlu0 %1278
  %v1281 = vmul.f32 %v1264, %v1279
  %v1282 = vpack.c.bf16 %v1281, %v1281
  %1284 = vrot.lane.b32.xlu0 %v1282, 32
  %v1285 = vpop.permute.xlu0 %1284
  %v1287 = vsel %vm204, %v1285, 0
  %1289 = vmatprep.subr.bf16.mxu0 0
  %1290 = vmatpush1.bf16.msra.mxu0 %v945
  %1291 = vmatprep.subr.bf16.mxu0 0
  %1292 = vmatpush1.bf16.msra.mxu0 %v946
  %1293 = vmatprep.subr.bf16.mxu0 0
  %1294 = vmatpush1.bf16.msra.mxu0 0
  %1295 = vmatprep.subr.bf16.mxu0 0
  %1296 = vmatpush1.bf16.msra.mxu0 0
  %1297 = vmatprep.subr.bf16.mxu0 0
  %1298 = vmatpush1.bf16.msra.mxu0 0
  %1299 = vmatprep.subr.bf16.mxu0 0
  %1300 = vmatpush1.bf16.msra.mxu0 0
  %1301 = vmatprep.subr.bf16.mxu0 0
  %1302 = vmatpush1.bf16.msra.mxu0 0
  %1303 = vmatprep.subr.bf16.mxu0 0
  %1304 = vmatpush1.bf16.msra.mxu0 0
  %1305 = vmatprep.subr.bf16.mxu0 0
  %1306 = vmatpush1.bf16.msra.mxu0 0
  %1307 = vmatprep.subr.bf16.mxu0 0
  %1308 = vmatpush1.bf16.msra.mxu0 0
  %1309 = vmatprep.subr.bf16.mxu0 0
  %1310 = vmatpush1.bf16.msra.mxu0 0
  %1311 = vmatprep.subr.bf16.mxu0 0
  %1312 = vmatpush1.bf16.msra.mxu0 0
  %1313 = vmatprep.subr.bf16.mxu0 0
  %1314 = vmatpush1.bf16.msra.mxu0 0
  %1315 = vmatprep.subr.bf16.mxu0 0
  %1316 = vmatpush1.bf16.msra.mxu0 0
  %1317 = vmatprep.subr.bf16.mxu0 0
  %1318 = vmatpush1.bf16.msra.mxu0 0
  %1319 = vmatprep.subr.bf16.mxu0 0
  %1320 = vmatpush1.bf16.msra.mxu0 0
  %1321 = vmatprep.mubr.bf16.mxu0 0
  %1322 = vmatmul.mubr.bf16.gmra.mrb[0].mxu0 %v1287
  %v1323 = vpop.f32.mrb[0].mxu0
  %v1324 = vadd.f32 0.0, %v1323
  %v1325 = vpop.f32.mrb[0].mxu0
  %v1326 = vpop.f32.mrb[0].mxu0
  %v1327 = vpop.f32.mrb[0].mxu0
  %1328 = vdwg.mxu0
  %v1329 = vadd.f32 %v924, %v1324
  %v1330 = vtanh.pop %v1329
  %v1331 = vmul.f32 %v39, %v1330
  %v1332 = vadd.f32 %v1331, %v40
  %v1333 = vmul.f32 %v1332, %v1275
  %1335 = vrot.lane.b32.xlu0 %v1332, 64
  %v1336 = vpop.permute.xlu0 %1335
  %v1338 = vmul.f32 %v1332, %v1336
  %1340 = vrot.lane.b32.xlu0 %v1338, 32
  %v1341 = vpop.permute.xlu0 %1340
  %v1343 = vadd.f32 %v1333, %v1341
  %v1344 = vtanh.pop %v1343
  %1346 = vrot.lane.b32.xlu0 %v1344, 64
  %v1347 = vpop.permute.xlu0 %1346
  %v1349 = vmul.f32 %v1332, %v1347
  %v1350 = vpack.c.bf16 %v1349, %v1349
  %1352 = vrot.lane.b32.xlu0 %v1350, 32
  %v1353 = vpop.permute.xlu0 %1352
  %v1355 = vsel %vm204, %v1353, 0
  %1357 = vmatprep.subr.bf16.mxu0 0
  %1358 = vmatpush1.bf16.msra.mxu0 %v945
  %1359 = vmatprep.subr.bf16.mxu0 0
  %1360 = vmatpush1.bf16.msra.mxu0 %v946
  %1361 = vmatprep.subr.bf16.mxu0 0
  %1362 = vmatpush1.bf16.msra.mxu0 0
  %1363 = vmatprep.subr.bf16.mxu0 0
  %1364 = vmatpush1.bf16.msra.mxu0 0
  %1365 = vmatprep.subr.bf16.mxu0 0
  %1366 = vmatpush1.bf16.msra.mxu0 0
  %1367 = vmatprep.subr.bf16.mxu0 0
  %1368 = vmatpush1.bf16.msra.mxu0 0
  %1369 = vmatprep.subr.bf16.mxu0 0
  %1370 = vmatpush1.bf16.msra.mxu0 0
  %1371 = vmatprep.subr.bf16.mxu0 0
  %1372 = vmatpush1.bf16.msra.mxu0 0
  %1373 = vmatprep.subr.bf16.mxu0 0
  %1374 = vmatpush1.bf16.msra.mxu0 0
  %1375 = vmatprep.subr.bf16.mxu0 0
  %1376 = vmatpush1.bf16.msra.mxu0 0
  %1377 = vmatprep.subr.bf16.mxu0 0
  %1378 = vmatpush1.bf16.msra.mxu0 0
  %1379 = vmatprep.subr.bf16.mxu0 0
  %1380 = vmatpush1.bf16.msra.mxu0 0
  %1381 = vmatprep.subr.bf16.mxu0 0
  %1382 = vmatpush1.bf16.msra.mxu0 0
  %1383 = vmatprep.subr.bf16.mxu0 0
  %1384 = vmatpush1.bf16.msra.mxu0 0
  %1385 = vmatprep.subr.bf16.mxu0 0
  %1386 = vmatpush1.bf16.msra.mxu0 0
  %1387 = vmatprep.subr.bf16.mxu0 0
  %1388 = vmatpush1.bf16.msra.mxu0 0
  %1389 = vmatprep.mubr.bf16.mxu0 0
  %1390 = vmatmul.mubr.bf16.gmra.mrb[0].mxu0 %v1355
  %v1391 = vpop.f32.mrb[0].mxu0
  %v1392 = vadd.f32 0.0, %v1391
  %v1393 = vpop.f32.mrb[0].mxu0
  %v1394 = vpop.f32.mrb[0].mxu0
  %v1395 = vpop.f32.mrb[0].mxu0
  %1396 = vdwg.mxu0
  %v1397 = vadd.f32 %v929, %v1392
  %v1398 = vtanh.pop %v1397
  %v1399 = vmul.f32 %v39, %v1398
  %v1400 = vadd.f32 %v1399, %v40
  %v1401 = vmul.f32 %v1400, %v1343
  %1403 = vrot.lane.b32.xlu0 %v1400, 64
  %v1404 = vpop.permute.xlu0 %1403
  %v1406 = vmul.f32 %v1400, %v1404
  %1408 = vrot.lane.b32.xlu0 %v1406, 32
  %v1409 = vpop.permute.xlu0 %1408
  %v1411 = vadd.f32 %v1401, %v1409
  %v1412 = vtanh.pop %v1411
  %1414 = vrot.lane.b32.xlu0 %v1412, 64
  %v1415 = vpop.permute.xlu0 %1414
  %v1417 = vmul.f32 %v1400, %v1415
  %v1418 = vpack.c.bf16 %v1417, %v1417
  %1420 = vrot.lane.b32.xlu0 %v1418, 32
  %v1421 = vpop.permute.xlu0 %1420
  %v1423 = vsel %vm204, %v1421, 0
  %1425 = vmatprep.subr.bf16.mxu0 0
  %1426 = vmatpush1.bf16.msra.mxu0 %v945
  %1427 = vmatprep.subr.bf16.mxu0 0
  %1428 = vmatpush1.bf16.msra.mxu0 %v946
  %1429 = vmatprep.subr.bf16.mxu0 0
  %1430 = vmatpush1.bf16.msra.mxu0 0
  %1431 = vmatprep.subr.bf16.mxu0 0
  %1432 = vmatpush1.bf16.msra.mxu0 0
  %1433 = vmatprep.subr.bf16.mxu0 0
  %1434 = vmatpush1.bf16.msra.mxu0 0
  %1435 = vmatprep.subr.bf16.mxu0 0
  %1436 = vmatpush1.bf16.msra.mxu0 0
  %1437 = vmatprep.subr.bf16.mxu0 0
  %1438 = vmatpush1.bf16.msra.mxu0 0
  %1439 = vmatprep.subr.bf16.mxu0 0
  %1440 = vmatpush1.bf16.msra.mxu0 0
  %1441 = vmatprep.subr.bf16.mxu0 0
  %1442 = vmatpush1.bf16.msra.mxu0 0
  %1443 = vmatprep.subr.bf16.mxu0 0
  %1444 = vmatpush1.bf16.msra.mxu0 0
  %1445 = vmatprep.subr.bf16.mxu0 0
  %1446 = vmatpush1.bf16.msra.mxu0 0
  %1447 = vmatprep.subr.bf16.mxu0 0
  %1448 = vmatpush1.bf16.msra.mxu0 0
  %1449 = vmatprep.subr.bf16.mxu0 0
  %1450 = vmatpush1.bf16.msra.mxu0 0
  %1451 = vmatprep.subr.bf16.mxu0 0
  %1452 = vmatpush1.bf16.msra.mxu0 0
  %1453 = vmatprep.subr.bf16.mxu0 0
  %1454 = vmatpush1.bf16.msra.mxu0 0
  %1455 = vmatprep.subr.bf16.mxu0 0
  %1456 = vmatpush1.bf16.msra.mxu0 0
  %1457 = vmatprep.mubr.bf16.mxu0 0
  %1458 = vmatmul.mubr.bf16.gmra.mrb[0].mxu0 %v1423
  %v1459 = vpop.f32.mrb[0].mxu0
  %v1460 = vadd.f32 0.0, %v1459
  %v1461 = vpop.f32.mrb[0].mxu0
  %v1462 = vpop.f32.mrb[0].mxu0
  %v1463 = vpop.f32.mrb[0].mxu0
  %1464 = vdwg.mxu0
  %v1465 = vadd.f32 %v934, %v1460
  %v1466 = vtanh.pop %v1465
  %v1467 = vmul.f32 %v39, %v1466
  %v1468 = vadd.f32 %v1467, %v40
  %v1469 = vmul.f32 %v1468, %v1411
  %1471 = vrot.lane.b32.xlu0 %v1468, 64
  %v1472 = vpop.permute.xlu0 %1471
  %v1474 = vmul.f32 %v1468, %v1472
  %1476 = vrot.lane.b32.xlu0 %v1474, 32
  %v1477 = vpop.permute.xlu0 %1476
  %v1479 = vadd.f32 %v1469, %v1477
  %v1480 = vtanh.pop %v1479
  %1482 = vrot.lane.b32.xlu0 %v1480, 64
  %v1483 = vpop.permute.xlu0 %1482
  %v1485 = vmul.f32 %v1468, %v1483
  %v1486 = vld [vmem:[%s7] sm:$0x1]
  %v1488 = vlaneseq
  %v1489 = vshrl.u32 %v1488, 7
  %v1490 = vsub.s32 0, %v1489
  %v1491 = vrot.slane %v1486, %v1490
  %1492 = vrot.lane.b32.xlu0 %v1491, 96
  %v1493 = vpop.permute.xlu0 %1492
  %v1495 = vmul.f32 %v1485, %v1493
  %1497 = vrot.lane.b32.xlu0 %v1495, 32
  %v1498 = vpop.permute.xlu0 %1497
  %v1500 = vsel %vm204, %v1498, 0.0
  %1501 = vadd.xlane.f32.xlu0 %v1500
  %v1502 = vpop.xlane.xlu0 %1501
  %s1503 = sld [smem:[#allocation3]]
  %v1504 = vstv %s1503
  %v1505 = vadd.f32 %v1502, %v1504
  %vm1506 = vcmask 7168
  %1507 = vst.msk [vmem:[%s9] sm:$0xff] %vm1506, %v1505
  // Predicated region
  $region38: #{lstm_forward.1} parent=0 // pred_check
    _
  $region39: #{lstm_forward.1} parent=0 // pred_check_branch
    %1509 = sbr.rel (0) target = $region41
  $region40: #{lstm_forward.1} parent=0 // pred_region
    _
  $region41: #{lstm_forward.1} parent=0 // pred_fallthru
    _
  // Predicated region
  $region42: #{lstm_forward.1} parent=0 // pred_check
    _
  $region43: #{lstm_forward.1} parent=0 // pred_check_branch
    %1511 = sbr.rel (0) target = $region45
  $region44: #{lstm_forward.1} parent=0 // pred_region
    _
  $region45: #{lstm_forward.1} parent=0 // pred_fallthru
    _

</llo_original>
